<compile_context>
chip_gen: v7x
topology: tpu7x:2x2x1
jax: 0.10.0
libtpu: 0.0.40
codegen_flags: <defaults>
</compile_context>

<pallas_src>
import jax
import jax.numpy as jnp
from jax import lax
from jax.experimental import pallas as pl
from jax.experimental.pallas import tpu as pltpu

# Small, module-consistent shapes.
N, H, W = 2, 16, 16
IN_PLANES = 32
PLANES = 32          # stride=1 path => residual requires in_planes == planes
C1 = PLANES // 4     # bottleneck width = 8
NG = PLANES // 8     # num_groups = 4
EPS = 1e-5           # PyTorch GroupNorm default eps


def bottleneck_forward(x_nchw, params):
    """x_nchw: (N, Cin, H, W) float32. params: PyTorch-shaped weights (OIHW)."""
    n, cin, h, w = x_nchw.shape
    hw = h * w
    nhw = n * hw
    hw_f = float(hw)
    assert cin == PLANES, (
        "stride=1 BottleneckBlock has no downsample; residual needs in_planes == planes")
    (w1, b1, g1, be1, w2, b2, g2, be2, w3, b3, g3, be3) = params

    # ---- wrapper-side precomputation (tiny, all outside the kernel) ---------
    # Channels-first weights, cast to bf16 for guaranteed single-pass MXU.
    w1_cf = w1.reshape(C1, cin).astype(jnp.bfloat16)                      # (C1, Cin)
    # conv2 OIHW -> (C1_out, 9*C1_in); column = (ky*3+kx)*C1 + ci, matching the
    # im2col row ordering built in the kernel.
    w2_cf = jnp.transpose(w2, (0, 2, 3, 1)).reshape(C1, 9 * C1).astype(jnp.bfloat16)
    w3_cf = w3.reshape(PLANES, C1).astype(jnp.bfloat16)                   # (Cout, C1)

    # Packed per-stage (bias, gamma, beta) columns -> one input per stage.
    pk1 = jnp.stack([b1, g1, be1], axis=1).astype(jnp.float32)            # (C1, 3)
    pk2 = jnp.stack([b2, g2, be2], axis=1).astype(jnp.float32)            # (C1, 3)
    pk3 = jnp.stack([b3, g3, be3], axis=1).astype(jnp.float32)            # (Cout, 3)

    def group_proj(c, groups):
        # proj @ per_channel_sums == per-channel group mean (per sample).
        cg = c // groups
        gid = jnp.arange(c) // cg
        return (gid[:, None] == gid[None, :]).astype(jnp.float32) / float(cg * hw)

    proj1 = group_proj(C1, NG)        # (C1, C1)   for norm1/norm2
    proj3 = group_proj(PLANES, NG)    # (Cout, Cout) for norm3

    # 3x3 zero-padding masks for the 9 taps over the fused (N*HW) lane axis.
    q = jnp.arange(nhw) % hw
    row = q // w
    col = q % w
    mrows = []
    for ky in range(3):
        for kx in range(3):
            dy, dx = ky - 1, kx - 1
            valid = ((row + dy >= 0) & (row + dy < h) &
                     (col + dx >= 0) & (col + dx < w))
            mrows.append(valid.astype(jnp.float32))
    masks = jnp.stack(mrows, axis=0)                                      # (9, N*HW)

    # Batch fused onto lanes: (Cin, N*HW); sample s occupies lanes [s*hw, (s+1)*hw).
    x_cf = jnp.transpose(x_nchw.reshape(n, cin, hw), (1, 0, 2)).reshape(cin, nhw)

    def kernel(x_ref, w1_ref, w2_ref, w3_ref, pk1_ref, pk2_ref, pk3_ref,
               p1_ref, p3_ref, mask_ref, o_ref, col_ref):

        def gn_affine(z, pk, proj):
            # z: raw (bias-free) conv output, (C, N*HW) f32.  Returns per-(channel,
            # sample) scale A and shift B with GroupNorm(z + bias)*gamma + beta
            # == z*A + B (biased variance, eps inside rsqrt, per-sample stats).
            b = pk[:, 0:1]
            gamma = pk[:, 1:2]
            beta = pk[:, 2:3]
            sum_cols, sq_cols = [], []
            for s in range(n):
                zs = z[:, s * hw:(s + 1) * hw]
                s1 = jnp.sum(zs, axis=1, keepdims=True)                   # (C, 1)
                s2 = jnp.sum(zs * zs, axis=1, keepdims=True)              # (C, 1)
                # Analytic bias fold: sum(z+b) and sum((z+b)^2).
                sum_cols.append(s1 + hw_f * b)
                sq_cols.append(s2 + (2.0 * b) * s1 + hw_f * (b * b))
            stats = jnp.concatenate(sum_cols + sq_cols, axis=1)           # (C, 2n)
            # ONE tiny matmul yields both the group mean and group E[y^2].
            ms = jnp.dot(proj, stats, preferred_element_type=jnp.float32)  # (C, 2n)
            mean = ms[:, :n]
            ey2 = ms[:, n:]
            inv = lax.rsqrt(ey2 - mean * mean + EPS)
            a = gamma * inv                                               # (C, n)
            bshift = beta + (b - mean) * a                                # (C, n)
            return a, bshift

        def affine_relu(z, a, bshift, dtype):
            # out[c, s*hw + p] = max(z[c, s*hw + p] * a[c, s] + bshift[c, s], 0)
            halves = [
                jnp.maximum(z[:, s * hw:(s + 1) * hw] * a[:, s:s + 1]
                            + bshift[:, s:s + 1], 0.0).astype(dtype)
                for s in range(n)]
            return jnp.concatenate(halves, axis=1)

        # --- conv1 (1x1) -> GroupNorm -> ReLU ---------------------------------
        z = jnp.dot(w1_ref[...], x_ref[...].astype(jnp.bfloat16),
                    preferred_element_type=jnp.float32)                   # (C1, N*HW)
        a, bs = gn_affine(z, pk1_ref[...], p1_ref[...])
        y = affine_relu(z, a, bs, jnp.float32)

        # --- conv2 (3x3, pad=1, stride=1): 9 lane rolls -> VMEM im2col -> 1 matmul
        for ky in range(3):
            for kx in range(3):
                dy, dx = ky - 1, kx - 1
                t = ky * 3 + kx
                if dy == 0 and dx == 0:
                    col_ref[t * C1:(t + 1) * C1, :] = y
                    continue
                off = dy * w + dx
                # shifted[c, p] = y[c, p + off]; cross-sample / wrap lanes are
                # exactly the zero-padded taps -> killed by the precomputed mask.
                shifted = pltpu.roll(y, (-off) % nhw, axis=1)
                col_ref[t * C1:(t + 1) * C1, :] = shifted * mask_ref[t:t + 1, :]
        z = jnp.dot(w2_ref[...], col_ref[...].astype(jnp.bfloat16),
                    preferred_element_type=jnp.float32)                   # (C1, N*HW)
        a, bs = gn_affine(z, pk2_ref[...], p1_ref[...])
        y = affine_relu(z, a, bs, jnp.bfloat16)       # bf16: only feeds conv3's MXU op

        # --- conv3 (1x1) -> GroupNorm -> ReLU, residual add + final ReLU ------
        z = jnp.dot(w3_ref[...], y,
                    preferred_element_type=jnp.float32)                   # (Cout, N*HW)
        a, bs = gn_affine(z, pk3_ref[...], p3_ref[...])
        for s in range(n):
            zs = z[:, s * hw:(s + 1) * hw]
            y3 = jnp.maximum(zs * a[:, s:s + 1] + bs[:, s:s + 1], 0.0)
            xs = x_ref[:, s * hw:(s + 1) * hw]        # re-read residual (no live x)
            o_ref[s] = jnp.maximum(xs + y3, 0.0)
        # TODO(synk): stride>1 downsample branch and batch/instance/none norm variants
        # are not exercised by this configuration and are not implemented.

    inputs = [x_cf, w1_cf, w2_cf, w3_cf, pk1, pk2, pk3, proj1, proj3, masks]

    def full_spec(arr):
        nd = arr.ndim
        return pl.BlockSpec(arr.shape, lambda i, _nd=nd: (0,) * _nd)

    out = pl.pallas_call(
        kernel,
        out_shape=jax.ShapeDtypeStruct((n, PLANES, hw), jnp.float32),
        grid=(1,),
        in_specs=[full_spec(a) for a in inputs],
        out_specs=pl.BlockSpec((n, PLANES, hw), lambda i: (0, 0, 0)),
        scratch_shapes=[pltpu.VMEM((9 * C1, nhw), jnp.float32)],   # im2col staging
        compiler_params=pltpu.CompilerParams(dimension_semantics=("arbitrary",)),
    )(*inputs)
    return out.reshape(n, PLANES, h, w)


def reference_forward(x_nchw, params):
    """Pure-JAX NCHW reference matching the PyTorch forward (group norm, stride=1)."""
    (w1, b1, g1, be1, w2, b2, g2, be2, w3, b3, g3, be3) = params

    def conv(x, w_oihw, b, pad):
        y = lax.conv_general_dilated(
            x, w_oihw, window_strides=(1, 1),
            padding=[(pad, pad), (pad, pad)],
            dimension_numbers=('NCHW', 'OIHW', 'NCHW'))
        return y + b.reshape(1, -1, 1, 1)

    def gn(x, gamma, beta, groups, eps=EPS):
        n, c, h, w = x.shape
        xg = x.reshape(n, groups, c // groups, h, w)
        mean = xg.mean(axis=(2, 3, 4), keepdims=True)
        var = ((xg - mean) ** 2).mean(axis=(2, 3, 4), keepdims=True)
        xn = ((xg - mean) / jnp.sqrt(var + eps)).reshape(n, c, h, w)
        return xn * gamma.reshape(1, -1, 1, 1) + beta.reshape(1, -1, 1, 1)

    y = jax.nn.relu(gn(conv(x_nchw, w1, b1, 0), g1, be1, NG))
    y = jax.nn.relu(gn(conv(y, w2, b2, 1), g2, be2, NG))
    y = jax.nn.relu(gn(conv(y, w3, b3, 0), g3, be3, NG))
    return jax.nn.relu(x_nchw + y)


if __name__ == "__main__":
    key = jax.random.PRNGKey(0)
    keys = jax.random.split(key, 13)
    x_nchw = jax.random.normal(keys[0], (N, IN_PLANES, H, W), jnp.float32)

    # Deterministic synthetic parameters (PyTorch shapes from the module __init__).
    w1 = 0.1 * jax.random.normal(keys[1], (C1, IN_PLANES, 1, 1), jnp.float32)  # conv1 OIHW
    b1 = 0.1 * jax.random.normal(keys[2], (C1,), jnp.float32)
    g1 = 1.0 + 0.1 * jax.random.normal(keys[3], (C1,), jnp.float32)
    be1 = 0.1 * jax.random.normal(keys[4], (C1,), jnp.float32)
    w2 = 0.1 * jax.random.normal(keys[5], (C1, C1, 3, 3), jnp.float32)         # conv2 OIHW
    b2 = 0.1 * jax.random.normal(keys[6], (C1,), jnp.float32)
    g2 = 1.0 + 0.1 * jax.random.normal(keys[7], (C1,), jnp.float32)
    be2 = 0.1 * jax.random.normal(keys[8], (C1,), jnp.float32)
    w3 = 0.1 * jax.random.normal(keys[9], (PLANES, C1, 1, 1), jnp.float32)     # conv3 OIHW
    b3 = 0.1 * jax.random.normal(keys[10], (PLANES,), jnp.float32)
    g3 = 1.0 + 0.1 * jax.random.normal(keys[11], (PLANES,), jnp.float32)
    be3 = 0.1 * jax.random.normal(keys[12], (PLANES,), jnp.float32)
    params = (w1, b1, g1, be1, w2, b2, g2, be2, w3, b3, g3, be3)

    out = jax.block_until_ready(bottleneck_forward(x_nchw, params))   # NCHW in, NCHW out

    ref = reference_forward(x_nchw, params)
    err = float(jnp.max(jnp.abs(out - ref)))
    assert out.shape == (N, PLANES, H, W)
    # Kernel intentionally uses bf16 MXU operands (and XLA's default-precision conv in
    # the reference is bf16-demoted on TPU too); tolerance sized for that.  Genuine
    # bugs (wrong tap / mean / scale) produce O(0.1-1) errors and still fail this.
    assert jnp.allclose(out, ref, atol=2e-2, rtol=2e-2), f"max abs err {err}"
    print("KERNEL_OK")
</pallas_src>

<mosaic_0001>
module attributes {stable_mosaic.version = 11 : i64} {
  func.func @kernel(%arg0: i32, %arg1: memref<32x512xf32, #tpu.memory_space<vmem>>, %arg2: memref<8x32xbf16, #tpu.memory_space<vmem>>, %arg3: memref<8x72xbf16, #tpu.memory_space<vmem>>, %arg4: memref<32x8xbf16, #tpu.memory_space<vmem>>, %arg5: memref<8x3xf32, #tpu.memory_space<vmem>>, %arg6: memref<8x3xf32, #tpu.memory_space<vmem>>, %arg7: memref<32x3xf32, #tpu.memory_space<vmem>>, %arg8: memref<8x8xf32, #tpu.memory_space<vmem>>, %arg9: memref<32x32xf32, #tpu.memory_space<vmem>>, %arg10: memref<9x512xf32, #tpu.memory_space<vmem>>, %arg11: memref<2x32x256xf32, #tpu.memory_space<vmem>>, %arg12: memref<72x512xf32, #tpu.memory_space<vmem>>) attributes {dimension_semantics = [#tpu.dimension_semantics<arbitrary>], iteration_bounds = array<i64: 1>, scalar_prefetch = 0 : i64, scratch_operands = 1 : i64, tpu.core_type = #tpu.core_type<tc>, window_params = [{pipeline_mode = #tpu.pipeline_mode<synchronous>, transform_indices = @transform_0, window_bounds = array<i64: 32, 512>}, {pipeline_mode = #tpu.pipeline_mode<synchronous>, transform_indices = @transform_1, window_bounds = array<i64: 8, 32>}, {pipeline_mode = #tpu.pipeline_mode<synchronous>, transform_indices = @transform_2, window_bounds = array<i64: 8, 72>}, {pipeline_mode = #tpu.pipeline_mode<synchronous>, transform_indices = @transform_3, window_bounds = array<i64: 32, 8>}, {pipeline_mode = #tpu.pipeline_mode<synchronous>, transform_indices = @transform_4, window_bounds = array<i64: 8, 3>}, {pipeline_mode = #tpu.pipeline_mode<synchronous>, transform_indices = @transform_5, window_bounds = array<i64: 8, 3>}, {pipeline_mode = #tpu.pipeline_mode<synchronous>, transform_indices = @transform_6, window_bounds = array<i64: 32, 3>}, {pipeline_mode = #tpu.pipeline_mode<synchronous>, transform_indices = @transform_7, window_bounds = array<i64: 8, 8>}, {pipeline_mode = #tpu.pipeline_mode<synchronous>, transform_indices = @transform_8, window_bounds = array<i64: 32, 32>}, {pipeline_mode = #tpu.pipeline_mode<synchronous>, transform_indices = @transform_9, window_bounds = array<i64: 9, 512>}, {pipeline_mode = #tpu.pipeline_mode<synchronous>, transform_indices = @transform_10, window_bounds = array<i64: 2, 32, 256>}]} {
    %c0 = arith.constant 0 : index
    %c0_0 = arith.constant 0 : index
    %0 = vector.load %arg2[%c0, %c0_0] : memref<8x32xbf16, #tpu.memory_space<vmem>>, vector<8x32xbf16>
    %c0_1 = arith.constant 0 : index
    %c0_2 = arith.constant 0 : index
    %1 = vector.load %arg1[%c0_1, %c0_2] : memref<32x512xf32, #tpu.memory_space<vmem>>, vector<32x512xf32>
    %2 = arith.truncf %1 : vector<32x512xf32> to vector<32x512xbf16>
    %cst = arith.constant dense<0.000000e+00> : vector<8x512xf32>
    %3 = tpu.matmul %0, %2, %cst {dimension_numbers = #tpu.dot_dimension_numbers<[1], [0], [0], [1], [0, 0, 1, 1], [], []>} : vector<8x32xbf16>, vector<32x512xbf16>, vector<8x512xf32> -> vector<8x512xf32>
    %c0_3 = arith.constant 0 : index
    %c0_4 = arith.constant 0 : index
    %4 = vector.load %arg5[%c0_3, %c0_4] : memref<8x3xf32, #tpu.memory_space<vmem>>, vector<8x3xf32>
    %c0_5 = arith.constant 0 : index
    %c0_6 = arith.constant 0 : index
    %5 = vector.load %arg8[%c0_5, %c0_6] : memref<8x8xf32, #tpu.memory_space<vmem>>, vector<8x8xf32>
    %6 = vector.extract_strided_slice %4 {offsets = [0, 0], sizes = [8, 1], strides = [1, 1]} : vector<8x3xf32> to vector<8x1xf32>
    %7 = vector.extract_strided_slice %4 {offsets = [0, 1], sizes = [8, 1], strides = [1, 1]} : vector<8x3xf32> to vector<8x1xf32>
    %8 = vector.extract_strided_slice %4 {offsets = [0, 2], sizes = [8, 1], strides = [1, 1]} : vector<8x3xf32> to vector<8x1xf32>
    %9 = vector.extract_strided_slice %3 {offsets = [0, 0], sizes = [8, 256], strides = [1, 1]} : vector<8x512xf32> to vector<8x256xf32>
    %cst_7 = arith.constant dense<0.000000e+00> : vector<8xf32>
    %10 = vector.multi_reduction <add>, %9, %cst_7 [1] : vector<8x256xf32> to vector<8xf32>
    %11 = vector.shape_cast %10 : vector<8xf32> to vector<8x1xf32>
    %12 = arith.mulf %9, %9 : vector<8x256xf32>
    %cst_8 = arith.constant dense<0.000000e+00> : vector<8xf32>
    %13 = vector.multi_reduction <add>, %12, %cst_8 [1] : vector<8x256xf32> to vector<8xf32>
    %14 = vector.shape_cast %13 : vector<8xf32> to vector<8x1xf32>
    %cst_9 = arith.constant 2.560000e+02 : f32
    %15 = vector.broadcast %cst_9 : f32 to vector<8x1xf32>
    %16 = arith.mulf %15, %6 : vector<8x1xf32>
    %17 = arith.addf %11, %16 : vector<8x1xf32>
    %cst_10 = arith.constant 2.000000e+00 : f32
    %18 = vector.broadcast %cst_10 : f32 to vector<8x1xf32>
    %19 = arith.mulf %18, %6 : vector<8x1xf32>
    %20 = arith.mulf %19, %11 : vector<8x1xf32>
    %21 = arith.addf %14, %20 : vector<8x1xf32>
    %22 = arith.mulf %6, %6 : vector<8x1xf32>
    %cst_11 = arith.constant 2.560000e+02 : f32
    %23 = vector.broadcast %cst_11 : f32 to vector<8x1xf32>
    %24 = arith.mulf %23, %22 : vector<8x1xf32>
    %25 = arith.addf %21, %24 : vector<8x1xf32>
    %26 = vector.extract_strided_slice %3 {offsets = [0, 256], sizes = [8, 256], strides = [1, 1]} : vector<8x512xf32> to vector<8x256xf32>
    %cst_12 = arith.constant dense<0.000000e+00> : vector<8xf32>
    %27 = vector.multi_reduction <add>, %26, %cst_12 [1] : vector<8x256xf32> to vector<8xf32>
    %28 = vector.shape_cast %27 : vector<8xf32> to vector<8x1xf32>
    %29 = arith.mulf %26, %26 : vector<8x256xf32>
    %cst_13 = arith.constant dense<0.000000e+00> : vector<8xf32>
    %30 = vector.multi_reduction <add>, %29, %cst_13 [1] : vector<8x256xf32> to vector<8xf32>
    %31 = vector.shape_cast %30 : vector<8xf32> to vector<8x1xf32>
    %cst_14 = arith.constant 2.560000e+02 : f32
    %32 = vector.broadcast %cst_14 : f32 to vector<8x1xf32>
    %33 = arith.mulf %32, %6 : vector<8x1xf32>
    %34 = arith.addf %28, %33 : vector<8x1xf32>
    %cst_15 = arith.constant 2.000000e+00 : f32
    %35 = vector.broadcast %cst_15 : f32 to vector<8x1xf32>
    %36 = arith.mulf %35, %6 : vector<8x1xf32>
    %37 = arith.mulf %36, %28 : vector<8x1xf32>
    %38 = arith.addf %31, %37 : vector<8x1xf32>
    %39 = arith.mulf %6, %6 : vector<8x1xf32>
    %cst_16 = arith.constant 2.560000e+02 : f32
    %40 = vector.broadcast %cst_16 : f32 to vector<8x1xf32>
    %41 = arith.mulf %40, %39 : vector<8x1xf32>
    %42 = arith.addf %38, %41 : vector<8x1xf32>
    %43 = tpu.concatenate %17, %34, %25, %42 in 1 : vector<8x1xf32>, vector<8x1xf32>, vector<8x1xf32>, vector<8x1xf32> -> vector<8x4xf32>
    %cst_17 = arith.constant dense<0.000000e+00> : vector<8x4xf32>
    %44 = tpu.matmul %5, %43, %cst_17 {dimension_numbers = #tpu.dot_dimension_numbers<[1], [0], [0], [1], [0, 0, 1, 1], [], []>} : vector<8x8xf32>, vector<8x4xf32>, vector<8x4xf32> -> vector<8x4xf32>
    %45 = vector.extract_strided_slice %44 {offsets = [0, 0], sizes = [8, 2], strides = [1, 1]} : vector<8x4xf32> to vector<8x2xf32>
    %46 = vector.extract_strided_slice %44 {offsets = [0, 2], sizes = [8, 2], strides = [1, 1]} : vector<8x4xf32> to vector<8x2xf32>
    %47 = arith.mulf %45, %45 : vector<8x2xf32>
    %48 = arith.subf %46, %47 : vector<8x2xf32>
    %cst_18 = arith.constant 9.99999974E-6 : f32
    %49 = vector.broadcast %cst_18 : f32 to vector<8x2xf32>
    %50 = arith.addf %48, %49 : vector<8x2xf32>
    %51 = math.rsqrt %50 : vector<8x2xf32>
    %52 = vector.broadcast %7 : vector<8x1xf32> to vector<8x2xf32>
    %53 = arith.mulf %52, %51 : vector<8x2xf32>
    %54 = vector.broadcast %6 : vector<8x1xf32> to vector<8x2xf32>
    %55 = arith.subf %54, %45 : vector<8x2xf32>
    %56 = arith.mulf %55, %53 : vector<8x2xf32>
    %57 = vector.broadcast %8 : vector<8x1xf32> to vector<8x2xf32>
    %58 = arith.addf %57, %56 : vector<8x2xf32>
    %59 = vector.extract_strided_slice %3 {offsets = [0, 0], sizes = [8, 256], strides = [1, 1]} : vector<8x512xf32> to vector<8x256xf32>
    %60 = vector.extract_strided_slice %53 {offsets = [0, 0], sizes = [8, 1], strides = [1, 1]} : vector<8x2xf32> to vector<8x1xf32>
    %61 = vector.broadcast %60 : vector<8x1xf32> to vector<8x256xf32>
    %62 = arith.mulf %59, %61 : vector<8x256xf32>
    %63 = vector.extract_strided_slice %58 {offsets = [0, 0], sizes = [8, 1], strides = [1, 1]} : vector<8x2xf32> to vector<8x1xf32>
    %64 = vector.broadcast %63 : vector<8x1xf32> to vector<8x256xf32>
    %65 = arith.addf %62, %64 : vector<8x256xf32>
    %cst_19 = arith.constant 0.000000e+00 : f32
    %66 = vector.broadcast %cst_19 : f32 to vector<8x256xf32>
    %67 = arith.maximumf %65, %66 : vector<8x256xf32>
    %68 = vector.extract_strided_slice %3 {offsets = [0, 256], sizes = [8, 256], strides = [1, 1]} : vector<8x512xf32> to vector<8x256xf32>
    %69 = vector.extract_strided_slice %53 {offsets = [0, 1], sizes = [8, 1], strides = [1, 1]} : vector<8x2xf32> to vector<8x1xf32>
    %70 = vector.broadcast %69 : vector<8x1xf32> to vector<8x256xf32>
    %71 = arith.mulf %68, %70 : vector<8x256xf32>
    %72 = vector.extract_strided_slice %58 {offsets = [0, 1], sizes = [8, 1], strides = [1, 1]} : vector<8x2xf32> to vector<8x1xf32>
    %73 = vector.broadcast %72 : vector<8x1xf32> to vector<8x256xf32>
    %74 = arith.addf %71, %73 : vector<8x256xf32>
    %cst_20 = arith.constant 0.000000e+00 : f32
    %75 = vector.broadcast %cst_20 : f32 to vector<8x256xf32>
    %76 = arith.maximumf %74, %75 : vector<8x256xf32>
    %77 = tpu.concatenate %67, %76 in 1 : vector<8x256xf32>, vector<8x256xf32> -> vector<8x512xf32>
    %c17_i32 = arith.constant 17 : i32
    %78 = tpu.dynamic_rotate %77 by %c17_i32 dim 1 : vector<8x512xf32>, i32 -> vector<8x512xf32>
    %c0_21 = arith.constant 0 : index
    %c0_22 = arith.constant 0 : index
    %79 = vector.load %arg10[%c0_21, %c0_22] : memref<9x512xf32, #tpu.memory_space<vmem>>, vector<1x512xf32>
    %80 = vector.broadcast %79 : vector<1x512xf32> to vector<8x512xf32>
    %81 = arith.mulf %78, %80 : vector<8x512xf32>
    %c0_23 = arith.constant 0 : index
    %c0_24 = arith.constant 0 : index
    %82 = vector.load %arg12[%c0_23, %c0_24] : memref<72x512xf32, #tpu.memory_space<vmem>>, vector<8x512xf32>
    tpu.vector_store %arg12[%c0_23, %c0_24], %81 {strides = array<i32>} : memref<72x512xf32, #tpu.memory_space<vmem>>, vector<8x512xf32>,
    %c16_i32 = arith.constant 16 : i32
    %83 = tpu.dynamic_rotate %77 by %c16_i32 dim 1 : vector<8x512xf32>, i32 -> vector<8x512xf32>
    %c1 = arith.constant 1 : index
    %c0_25 = arith.constant 0 : index
    %84 = vector.load %arg10[%c1, %c0_25] : memref<9x512xf32, #tpu.memory_space<vmem>>, vector<1x512xf32>
    %85 = vector.broadcast %84 : vector<1x512xf32> to vector<8x512xf32>
    %86 = arith.mulf %83, %85 : vector<8x512xf32>
    %c8 = arith.constant 8 : index
    %c0_26 = arith.constant 0 : index
    %87 = vector.load %arg12[%c8, %c0_26] : memref<72x512xf32, #tpu.memory_space<vmem>>, vector<8x512xf32>
    tpu.vector_store %arg12[%c8, %c0_26], %86 {strides = array<i32>} : memref<72x512xf32, #tpu.memory_space<vmem>>, vector<8x512xf32>,
    %c15_i32 = arith.constant 15 : i32
    %88 = tpu.dynamic_rotate %77 by %c15_i32 dim 1 : vector<8x512xf32>, i32 -> vector<8x512xf32>
    %c2 = arith.constant 2 : index
    %c0_27 = arith.constant 0 : index
    %89 = vector.load %arg10[%c2, %c0_27] : memref<9x512xf32, #tpu.memory_space<vmem>>, vector<1x512xf32>
    %90 = vector.broadcast %89 : vector<1x512xf32> to vector<8x512xf32>
    %91 = arith.mulf %88, %90 : vector<8x512xf32>
    %c16 = arith.constant 16 : index
    %c0_28 = arith.constant 0 : index
    %92 = vector.load %arg12[%c16, %c0_28] : memref<72x512xf32, #tpu.memory_space<vmem>>, vector<8x512xf32>
    tpu.vector_store %arg12[%c16, %c0_28], %91 {strides = array<i32>} : memref<72x512xf32, #tpu.memory_space<vmem>>, vector<8x512xf32>,
    %c1_i32 = arith.constant 1 : i32
    %93 = tpu.dynamic_rotate %77 by %c1_i32 dim 1 : vector<8x512xf32>, i32 -> vector<8x512xf32>
    %c3 = arith.constant 3 : index
    %c0_29 = arith.constant 0 : index
    %94 = vector.load %arg10[%c3, %c0_29] : memref<9x512xf32, #tpu.memory_space<vmem>>, vector<1x512xf32>
    %95 = vector.broadcast %94 : vector<1x512xf32> to vector<8x512xf32>
    %96 = arith.mulf %93, %95 : vector<8x512xf32>
    %c24 = arith.constant 24 : index
    %c0_30 = arith.constant 0 : index
    %97 = vector.load %arg12[%c24, %c0_30] : memref<72x512xf32, #tpu.memory_space<vmem>>, vector<8x512xf32>
    tpu.vector_store %arg12[%c24, %c0_30], %96 {strides = array<i32>} : memref<72x512xf32, #tpu.memory_space<vmem>>, vector<8x512xf32>,
    %c32 = arith.constant 32 : index
    %c0_31 = arith.constant 0 : index
    %98 = vector.load %arg12[%c32, %c0_31] : memref<72x512xf32, #tpu.memory_space<vmem>>, vector<8x512xf32>
    tpu.vector_store %arg12[%c32, %c0_31], %77 {strides = array<i32>} : memref<72x512xf32, #tpu.memory_space<vmem>>, vector<8x512xf32>,
    %c511_i32 = arith.constant 511 : i32
    %99 = tpu.dynamic_rotate %77 by %c511_i32 dim 1 : vector<8x512xf32>, i32 -> vector<8x512xf32>
    %c5 = arith.constant 5 : index
    %c0_32 = arith.constant 0 : index
    %100 = vector.load %arg10[%c5, %c0_32] : memref<9x512xf32, #tpu.memory_space<vmem>>, vector<1x512xf32>
    %101 = vector.broadcast %100 : vector<1x512xf32> to vector<8x512xf32>
    %102 = arith.mulf %99, %101 : vector<8x512xf32>
    %c40 = arith.constant 40 : index
    %c0_33 = arith.constant 0 : index
    %103 = vector.load %arg12[%c40, %c0_33] : memref<72x512xf32, #tpu.memory_space<vmem>>, vector<8x512xf32>
    tpu.vector_store %arg12[%c40, %c0_33], %102 {strides = array<i32>} : memref<72x512xf32, #tpu.memory_space<vmem>>, vector<8x512xf32>,
    %c497_i32 = arith.constant 497 : i32
    %104 = tpu.dynamic_rotate %77 by %c497_i32 dim 1 : vector<8x512xf32>, i32 -> vector<8x512xf32>
    %c6 = arith.constant 6 : index
    %c0_34 = arith.constant 0 : index
    %105 = vector.load %arg10[%c6, %c0_34] : memref<9x512xf32, #tpu.memory_space<vmem>>, vector<1x512xf32>
    %106 = vector.broadcast %105 : vector<1x512xf32> to vector<8x512xf32>
    %107 = arith.mulf %104, %106 : vector<8x512xf32>
    %c48 = arith.constant 48 : index
    %c0_35 = arith.constant 0 : index
    %108 = vector.load %arg12[%c48, %c0_35] : memref<72x512xf32, #tpu.memory_space<vmem>>, vector<8x512xf32>
    tpu.vector_store %arg12[%c48, %c0_35], %107 {strides = array<i32>} : memref<72x512xf32, #tpu.memory_space<vmem>>, vector<8x512xf32>,
    %c496_i32 = arith.constant 496 : i32
    %109 = tpu.dynamic_rotate %77 by %c496_i32 dim 1 : vector<8x512xf32>, i32 -> vector<8x512xf32>
    %c7 = arith.constant 7 : index
    %c0_36 = arith.constant 0 : index
    %110 = vector.load %arg10[%c7, %c0_36] : memref<9x512xf32, #tpu.memory_space<vmem>>, vector<1x512xf32>
    %111 = vector.broadcast %110 : vector<1x512xf32> to vector<8x512xf32>
    %112 = arith.mulf %109, %111 : vector<8x512xf32>
    %c56 = arith.constant 56 : index
    %c0_37 = arith.constant 0 : index
    %113 = vector.load %arg12[%c56, %c0_37] : memref<72x512xf32, #tpu.memory_space<vmem>>, vector<8x512xf32>
    tpu.vector_store %arg12[%c56, %c0_37], %112 {strides = array<i32>} : memref<72x512xf32, #tpu.memory_space<vmem>>, vector<8x512xf32>,
    %c495_i32 = arith.constant 495 : i32
    %114 = tpu.dynamic_rotate %77 by %c495_i32 dim 1 : vector<8x512xf32>, i32 -> vector<8x512xf32>
    %c8_38 = arith.constant 8 : index
    %c0_39 = arith.constant 0 : index
    %115 = vector.load %arg10[%c8_38, %c0_39] : memref<9x512xf32, #tpu.memory_space<vmem>>, vector<1x512xf32>
    %116 = vector.broadcast %115 : vector<1x512xf32> to vector<8x512xf32>
    %117 = arith.mulf %114, %116 : vector<8x512xf32>
    %c64 = arith.constant 64 : index
    %c0_40 = arith.constant 0 : index
    %118 = vector.load %arg12[%c64, %c0_40] : memref<72x512xf32, #tpu.memory_space<vmem>>, vector<8x512xf32>
    tpu.vector_store %arg12[%c64, %c0_40], %117 {strides = array<i32>} : memref<72x512xf32, #tpu.memory_space<vmem>>, vector<8x512xf32>,
    %c0_41 = arith.constant 0 : index
    %c0_42 = arith.constant 0 : index
    %119 = vector.load %arg3[%c0_41, %c0_42] : memref<8x72xbf16, #tpu.memory_space<vmem>>, vector<8x72xbf16>
    %c0_43 = arith.constant 0 : index
    %c0_44 = arith.constant 0 : index
    %120 = vector.load %arg12[%c0_43, %c0_44] : memref<72x512xf32, #tpu.memory_space<vmem>>, vector<72x512xf32>
    %121 = arith.truncf %120 : vector<72x512xf32> to vector<72x512xbf16>
    %cst_45 = arith.constant dense<0.000000e+00> : vector<8x512xf32>
    %122 = tpu.matmul %119, %121, %cst_45 {dimension_numbers = #tpu.dot_dimension_numbers<[1], [0], [0], [1], [0, 0, 1, 1], [], []>} : vector<8x72xbf16>, vector<72x512xbf16>, vector<8x512xf32> -> vector<8x512xf32>
    %c0_46 = arith.constant 0 : index
    %c0_47 = arith.constant 0 : index
    %123 = vector.load %arg6[%c0_46, %c0_47] : memref<8x3xf32, #tpu.memory_space<vmem>>, vector<8x3xf32>
    %c0_48 = arith.constant 0 : index
    %c0_49 = arith.constant 0 : index
    %124 = vector.load %arg8[%c0_48, %c0_49] : memref<8x8xf32, #tpu.memory_space<vmem>>, vector<8x8xf32>
    %125 = vector.extract_strided_slice %123 {offsets = [0, 0], sizes = [8, 1], strides = [1, 1]} : vector<8x3xf32> to vector<8x1xf32>
    %126 = vector.extract_strided_slice %123 {offsets = [0, 1], sizes = [8, 1], strides = [1, 1]} : vector<8x3xf32> to vector<8x1xf32>
    %127 = vector.extract_strided_slice %123 {offsets = [0, 2], sizes = [8, 1], strides = [1, 1]} : vector<8x3xf32> to vector<8x1xf32>
    %128 = vector.extract_strided_slice %122 {offsets = [0, 0], sizes = [8, 256], strides = [1, 1]} : vector<8x512xf32> to vector<8x256xf32>
    %cst_50 = arith.constant dense<0.000000e+00> : vector<8xf32>
    %129 = vector.multi_reduction <add>, %128, %cst_50 [1] : vector<8x256xf32> to vector<8xf32>
    %130 = vector.shape_cast %129 : vector<8xf32> to vector<8x1xf32>
    %131 = arith.mulf %128, %128 : vector<8x256xf32>
    %cst_51 = arith.constant dense<0.000000e+00> : vector<8xf32>
    %132 = vector.multi_reduction <add>, %131, %cst_51 [1] : vector<8x256xf32> to vector<8xf32>
    %133 = vector.shape_cast %132 : vector<8xf32> to vector<8x1xf32>
    %cst_52 = arith.constant 2.560000e+02 : f32
    %134 = vector.broadcast %cst_52 : f32 to vector<8x1xf32>
    %135 = arith.mulf %134, %125 : vector<8x1xf32>
    %136 = arith.addf %130, %135 : vector<8x1xf32>
    %cst_53 = arith.constant 2.000000e+00 : f32
    %137 = vector.broadcast %cst_53 : f32 to vector<8x1xf32>
    %138 = arith.mulf %137, %125 : vector<8x1xf32>
    %139 = arith.mulf %138, %130 : vector<8x1xf32>
    %140 = arith.addf %133, %139 : vector<8x1xf32>
    %141 = arith.mulf %125, %125 : vector<8x1xf32>
    %cst_54 = arith.constant 2.560000e+02 : f32
    %142 = vector.broadcast %cst_54 : f32 to vector<8x1xf32>
    %143 = arith.mulf %142, %141 : vector<8x1xf32>
    %144 = arith.addf %140, %143 : vector<8x1xf32>
    %145 = vector.extract_strided_slice %122 {offsets = [0, 256], sizes = [8, 256], strides = [1, 1]} : vector<8x512xf32> to vector<8x256xf32>
    %cst_55 = arith.constant dense<0.000000e+00> : vector<8xf32>
    %146 = vector.multi_reduction <add>, %145, %cst_55 [1] : vector<8x256xf32> to vector<8xf32>
    %147 = vector.shape_cast %146 : vector<8xf32> to vector<8x1xf32>
    %148 = arith.mulf %145, %145 : vector<8x256xf32>
    %cst_56 = arith.constant dense<0.000000e+00> : vector<8xf32>
    %149 = vector.multi_reduction <add>, %148, %cst_56 [1] : vector<8x256xf32> to vector<8xf32>
    %150 = vector.shape_cast %149 : vector<8xf32> to vector<8x1xf32>
    %cst_57 = arith.constant 2.560000e+02 : f32
    %151 = vector.broadcast %cst_57 : f32 to vector<8x1xf32>
    %152 = arith.mulf %151, %125 : vector<8x1xf32>
    %153 = arith.addf %147, %152 : vector<8x1xf32>
    %cst_58 = arith.constant 2.000000e+00 : f32
    %154 = vector.broadcast %cst_58 : f32 to vector<8x1xf32>
    %155 = arith.mulf %154, %125 : vector<8x1xf32>
    %156 = arith.mulf %155, %147 : vector<8x1xf32>
    %157 = arith.addf %150, %156 : vector<8x1xf32>
    %158 = arith.mulf %125, %125 : vector<8x1xf32>
    %cst_59 = arith.constant 2.560000e+02 : f32
    %159 = vector.broadcast %cst_59 : f32 to vector<8x1xf32>
    %160 = arith.mulf %159, %158 : vector<8x1xf32>
    %161 = arith.addf %157, %160 : vector<8x1xf32>
    %162 = tpu.concatenate %136, %153, %144, %161 in 1 : vector<8x1xf32>, vector<8x1xf32>, vector<8x1xf32>, vector<8x1xf32> -> vector<8x4xf32>
    %cst_60 = arith.constant dense<0.000000e+00> : vector<8x4xf32>
    %163 = tpu.matmul %124, %162, %cst_60 {dimension_numbers = #tpu.dot_dimension_numbers<[1], [0], [0], [1], [0, 0, 1, 1], [], []>} : vector<8x8xf32>, vector<8x4xf32>, vector<8x4xf32> -> vector<8x4xf32>
    %164 = vector.extract_strided_slice %163 {offsets = [0, 0], sizes = [8, 2], strides = [1, 1]} : vector<8x4xf32> to vector<8x2xf32>
    %165 = vector.extract_strided_slice %163 {offsets = [0, 2], sizes = [8, 2], strides = [1, 1]} : vector<8x4xf32> to vector<8x2xf32>
    %166 = arith.mulf %164, %164 : vector<8x2xf32>
    %167 = arith.subf %165, %166 : vector<8x2xf32>
    %cst_61 = arith.constant 9.99999974E-6 : f32
    %168 = vector.broadcast %cst_61 : f32 to vector<8x2xf32>
    %169 = arith.addf %167, %168 : vector<8x2xf32>
    %170 = math.rsqrt %169 : vector<8x2xf32>
    %171 = vector.broadcast %126 : vector<8x1xf32> to vector<8x2xf32>
    %172 = arith.mulf %171, %170 : vector<8x2xf32>
    %173 = vector.broadcast %125 : vector<8x1xf32> to vector<8x2xf32>
    %174 = arith.subf %173, %164 : vector<8x2xf32>
    %175 = arith.mulf %174, %172 : vector<8x2xf32>
    %176 = vector.broadcast %127 : vector<8x1xf32> to vector<8x2xf32>
    %177 = arith.addf %176, %175 : vector<8x2xf32>
    %178 = vector.extract_strided_slice %122 {offsets = [0, 0], sizes = [8, 256], strides = [1, 1]} : vector<8x512xf32> to vector<8x256xf32>
    %179 = vector.extract_strided_slice %172 {offsets = [0, 0], sizes = [8, 1], strides = [1, 1]} : vector<8x2xf32> to vector<8x1xf32>
    %180 = vector.broadcast %179 : vector<8x1xf32> to vector<8x256xf32>
    %181 = arith.mulf %178, %180 : vector<8x256xf32>
    %182 = vector.extract_strided_slice %177 {offsets = [0, 0], sizes = [8, 1], strides = [1, 1]} : vector<8x2xf32> to vector<8x1xf32>
    %183 = vector.broadcast %182 : vector<8x1xf32> to vector<8x256xf32>
    %184 = arith.addf %181, %183 : vector<8x256xf32>
    %cst_62 = arith.constant 0.000000e+00 : f32
    %185 = vector.broadcast %cst_62 : f32 to vector<8x256xf32>
    %186 = arith.maximumf %184, %185 : vector<8x256xf32>
    %187 = arith.truncf %186 : vector<8x256xf32> to vector<8x256xbf16>
    %188 = vector.extract_strided_slice %122 {offsets = [0, 256], sizes = [8, 256], strides = [1, 1]} : vector<8x512xf32> to vector<8x256xf32>
    %189 = vector.extract_strided_slice %172 {offsets = [0, 1], sizes = [8, 1], strides = [1, 1]} : vector<8x2xf32> to vector<8x1xf32>
    %190 = vector.broadcast %189 : vector<8x1xf32> to vector<8x256xf32>
    %191 = arith.mulf %188, %190 : vector<8x256xf32>
    %192 = vector.extract_strided_slice %177 {offsets = [0, 1], sizes = [8, 1], strides = [1, 1]} : vector<8x2xf32> to vector<8x1xf32>
    %193 = vector.broadcast %192 : vector<8x1xf32> to vector<8x256xf32>
    %194 = arith.addf %191, %193 : vector<8x256xf32>
    %cst_63 = arith.constant 0.000000e+00 : f32
    %195 = vector.broadcast %cst_63 : f32 to vector<8x256xf32>
    %196 = arith.maximumf %194, %195 : vector<8x256xf32>
    %197 = arith.truncf %196 : vector<8x256xf32> to vector<8x256xbf16>
    %198 = tpu.concatenate %187, %197 in 1 : vector<8x256xbf16>, vector<8x256xbf16> -> vector<8x512xbf16>
    %c0_64 = arith.constant 0 : index
    %c0_65 = arith.constant 0 : index
    %199 = vector.load %arg4[%c0_64, %c0_65] : memref<32x8xbf16, #tpu.memory_space<vmem>>, vector<32x8xbf16>
    %cst_66 = arith.constant dense<0.000000e+00> : vector<32x512xf32>
    %200 = tpu.matmul %199, %198, %cst_66 {dimension_numbers = #tpu.dot_dimension_numbers<[1], [0], [0], [1], [0, 0, 1, 1], [], []>} : vector<32x8xbf16>, vector<8x512xbf16>, vector<32x512xf32> -> vector<32x512xf32>
    %c0_67 = arith.constant 0 : index
    %c0_68 = arith.constant 0 : index
    %201 = vector.load %arg7[%c0_67, %c0_68] : memref<32x3xf32, #tpu.memory_space<vmem>>, vector<32x3xf32>
    %c0_69 = arith.constant 0 : index
    %c0_70 = arith.constant 0 : index
    %202 = vector.load %arg9[%c0_69, %c0_70] : memref<32x32xf32, #tpu.memory_space<vmem>>, vector<32x32xf32>
    %203 = vector.extract_strided_slice %201 {offsets = [0, 0], sizes = [32, 1], strides = [1, 1]} : vector<32x3xf32> to vector<32x1xf32>
    %204 = vector.extract_strided_slice %201 {offsets = [0, 1], sizes = [32, 1], strides = [1, 1]} : vector<32x3xf32> to vector<32x1xf32>
    %205 = vector.extract_strided_slice %201 {offsets = [0, 2], sizes = [32, 1], strides = [1, 1]} : vector<32x3xf32> to vector<32x1xf32>
    %206 = vector.extract_strided_slice %200 {offsets = [0, 0], sizes = [32, 256], strides = [1, 1]} : vector<32x512xf32> to vector<32x256xf32>
    %cst_71 = arith.constant dense<0.000000e+00> : vector<32xf32>
    %207 = vector.multi_reduction <add>, %206, %cst_71 [1] : vector<32x256xf32> to vector<32xf32>
    %208 = vector.shape_cast %207 : vector<32xf32> to vector<32x1xf32>
    %209 = arith.mulf %206, %206 : vector<32x256xf32>
    %cst_72 = arith.constant dense<0.000000e+00> : vector<32xf32>
    %210 = vector.multi_reduction <add>, %209, %cst_72 [1] : vector<32x256xf32> to vector<32xf32>
    %211 = vector.shape_cast %210 : vector<32xf32> to vector<32x1xf32>
    %cst_73 = arith.constant 2.560000e+02 : f32
    %212 = vector.broadcast %cst_73 : f32 to vector<32x1xf32>
    %213 = arith.mulf %212, %203 : vector<32x1xf32>
    %214 = arith.addf %208, %213 : vector<32x1xf32>
    %cst_74 = arith.constant 2.000000e+00 : f32
    %215 = vector.broadcast %cst_74 : f32 to vector<32x1xf32>
    %216 = arith.mulf %215, %203 : vector<32x1xf32>
    %217 = arith.mulf %216, %208 : vector<32x1xf32>
    %218 = arith.addf %211, %217 : vector<32x1xf32>
    %219 = arith.mulf %203, %203 : vector<32x1xf32>
    %cst_75 = arith.constant 2.560000e+02 : f32
    %220 = vector.broadcast %cst_75 : f32 to vector<32x1xf32>
    %221 = arith.mulf %220, %219 : vector<32x1xf32>
    %222 = arith.addf %218, %221 : vector<32x1xf32>
    %223 = vector.extract_strided_slice %200 {offsets = [0, 256], sizes = [32, 256], strides = [1, 1]} : vector<32x512xf32> to vector<32x256xf32>
    %cst_76 = arith.constant dense<0.000000e+00> : vector<32xf32>
    %224 = vector.multi_reduction <add>, %223, %cst_76 [1] : vector<32x256xf32> to vector<32xf32>
    %225 = vector.shape_cast %224 : vector<32xf32> to vector<32x1xf32>
    %226 = arith.mulf %223, %223 : vector<32x256xf32>
    %cst_77 = arith.constant dense<0.000000e+00> : vector<32xf32>
    %227 = vector.multi_reduction <add>, %226, %cst_77 [1] : vector<32x256xf32> to vector<32xf32>
    %228 = vector.shape_cast %227 : vector<32xf32> to vector<32x1xf32>
    %cst_78 = arith.constant 2.560000e+02 : f32
    %229 = vector.broadcast %cst_78 : f32 to vector<32x1xf32>
    %230 = arith.mulf %229, %203 : vector<32x1xf32>
    %231 = arith.addf %225, %230 : vector<32x1xf32>
    %cst_79 = arith.constant 2.000000e+00 : f32
    %232 = vector.broadcast %cst_79 : f32 to vector<32x1xf32>
    %233 = arith.mulf %232, %203 : vector<32x1xf32>
    %234 = arith.mulf %233, %225 : vector<32x1xf32>
    %235 = arith.addf %228, %234 : vector<32x1xf32>
    %236 = arith.mulf %203, %203 : vector<32x1xf32>
    %cst_80 = arith.constant 2.560000e+02 : f32
    %237 = vector.broadcast %cst_80 : f32 to vector<32x1xf32>
    %238 = arith.mulf %237, %236 : vector<32x1xf32>
    %239 = arith.addf %235, %238 : vector<32x1xf32>
    %240 = tpu.concatenate %214, %231, %222, %239 in 1 : vector<32x1xf32>, vector<32x1xf32>, vector<32x1xf32>, vector<32x1xf32> -> vector<32x4xf32>
    %cst_81 = arith.constant dense<0.000000e+00> : vector<32x4xf32>
    %241 = tpu.matmul %202, %240, %cst_81 {dimension_numbers = #tpu.dot_dimension_numbers<[1], [0], [0], [1], [0, 0, 1, 1], [], []>} : vector<32x32xf32>, vector<32x4xf32>, vector<32x4xf32> -> vector<32x4xf32>
    %242 = vector.extract_strided_slice %241 {offsets = [0, 0], sizes = [32, 2], strides = [1, 1]} : vector<32x4xf32> to vector<32x2xf32>
    %243 = vector.extract_strided_slice %241 {offsets = [0, 2], sizes = [32, 2], strides = [1, 1]} : vector<32x4xf32> to vector<32x2xf32>
    %244 = arith.mulf %242, %242 : vector<32x2xf32>
    %245 = arith.subf %243, %244 : vector<32x2xf32>
    %cst_82 = arith.constant 9.99999974E-6 : f32
    %246 = vector.broadcast %cst_82 : f32 to vector<32x2xf32>
    %247 = arith.addf %245, %246 : vector<32x2xf32>
    %248 = math.rsqrt %247 : vector<32x2xf32>
    %249 = vector.broadcast %204 : vector<32x1xf32> to vector<32x2xf32>
    %250 = arith.mulf %249, %248 : vector<32x2xf32>
    %251 = vector.broadcast %203 : vector<32x1xf32> to vector<32x2xf32>
    %252 = arith.subf %251, %242 : vector<32x2xf32>
    %253 = arith.mulf %252, %250 : vector<32x2xf32>
    %254 = vector.broadcast %205 : vector<32x1xf32> to vector<32x2xf32>
    %255 = arith.addf %254, %253 : vector<32x2xf32>
    %256 = vector.extract_strided_slice %200 {offsets = [0, 0], sizes = [32, 256], strides = [1, 1]} : vector<32x512xf32> to vector<32x256xf32>
    %257 = vector.extract_strided_slice %250 {offsets = [0, 0], sizes = [32, 1], strides = [1, 1]} : vector<32x2xf32> to vector<32x1xf32>
    %258 = vector.broadcast %257 : vector<32x1xf32> to vector<32x256xf32>
    %259 = arith.mulf %256, %258 : vector<32x256xf32>
    %260 = vector.extract_strided_slice %255 {offsets = [0, 0], sizes = [32, 1], strides = [1, 1]} : vector<32x2xf32> to vector<32x1xf32>
    %261 = vector.broadcast %260 : vector<32x1xf32> to vector<32x256xf32>
    %262 = arith.addf %259, %261 : vector<32x256xf32>
    %cst_83 = arith.constant 0.000000e+00 : f32
    %263 = vector.broadcast %cst_83 : f32 to vector<32x256xf32>
    %264 = arith.maximumf %262, %263 : vector<32x256xf32>
    %c0_84 = arith.constant 0 : index
    %c0_85 = arith.constant 0 : index
    %265 = vector.load %arg1[%c0_84, %c0_85] : memref<32x512xf32, #tpu.memory_space<vmem>>, vector<32x256xf32>
    %266 = arith.addf %265, %264 : vector<32x256xf32>
    %cst_86 = arith.constant 0.000000e+00 : f32
    %267 = vector.broadcast %cst_86 : f32 to vector<32x256xf32>
    %268 = arith.maximumf %266, %267 : vector<32x256xf32>
    %c0_87 = arith.constant 0 : index
    %c0_88 = arith.constant 0 : index
    %c0_89 = arith.constant 0 : index
    %269 = vector.load %arg11[%c0_87, %c0_88, %c0_89] : memref<2x32x256xf32, #tpu.memory_space<vmem>>, vector<1x32x256xf32>
    %270 = vector.shape_cast %269 : vector<1x32x256xf32> to vector<32x256xf32>
    %271 = vector.shape_cast %268 : vector<32x256xf32> to vector<1x32x256xf32>
    tpu.vector_store %arg11[%c0_87, %c0_88, %c0_89], %271 {strides = array<i32>} : memref<2x32x256xf32, #tpu.memory_space<vmem>>, vector<1x32x256xf32>,
    %272 = vector.extract_strided_slice %200 {offsets = [0, 256], sizes = [32, 256], strides = [1, 1]} : vector<32x512xf32> to vector<32x256xf32>
    %273 = vector.extract_strided_slice %250 {offsets = [0, 1], sizes = [32, 1], strides = [1, 1]} : vector<32x2xf32> to vector<32x1xf32>
    %274 = vector.broadcast %273 : vector<32x1xf32> to vector<32x256xf32>
    %275 = arith.mulf %272, %274 : vector<32x256xf32>
    %276 = vector.extract_strided_slice %255 {offsets = [0, 1], sizes = [32, 1], strides = [1, 1]} : vector<32x2xf32> to vector<32x1xf32>
    %277 = vector.broadcast %276 : vector<32x1xf32> to vector<32x256xf32>
    %278 = arith.addf %275, %277 : vector<32x256xf32>
    %cst_90 = arith.constant 0.000000e+00 : f32
    %279 = vector.broadcast %cst_90 : f32 to vector<32x256xf32>
    %280 = arith.maximumf %278, %279 : vector<32x256xf32>
    %c0_91 = arith.constant 0 : index
    %c256 = arith.constant 256 : index
    %281 = vector.load %arg1[%c0_91, %c256] : memref<32x512xf32, #tpu.memory_space<vmem>>, vector<32x256xf32>
    %282 = arith.addf %281, %280 : vector<32x256xf32>
    %cst_92 = arith.constant 0.000000e+00 : f32
    %283 = vector.broadcast %cst_92 : f32 to vector<32x256xf32>
    %284 = arith.maximumf %282, %283 : vector<32x256xf32>
    %c1_93 = arith.constant 1 : index
    %c0_94 = arith.constant 0 : index
    %c0_95 = arith.constant 0 : index
    %285 = vector.load %arg11[%c1_93, %c0_94, %c0_95] : memref<2x32x256xf32, #tpu.memory_space<vmem>>, vector<1x32x256xf32>
    %286 = vector.shape_cast %285 : vector<1x32x256xf32> to vector<32x256xf32>
    %287 = vector.shape_cast %284 : vector<32x256xf32> to vector<1x32x256xf32>
    tpu.vector_store %arg11[%c1_93, %c0_94, %c0_95], %287 {strides = array<i32>} : memref<2x32x256xf32, #tpu.memory_space<vmem>>, vector<1x32x256xf32>,
    return
  }
  func.func @transform_0(%arg0: i32) -> (i32, i32) {
    %c0_i32 = arith.constant 0 : i32
    %c0_i32_0 = arith.constant 0 : i32
    %c0_i32_1 = arith.constant 0 : i32
    return %c0_i32, %c0_i32_0 : i32, i32
  }
  func.func @transform_1(%arg0: i32) -> (i32, i32) {
    %c0_i32 = arith.constant 0 : i32
    %c0_i32_0 = arith.constant 0 : i32
    %c0_i32_1 = arith.constant 0 : i32
    return %c0_i32, %c0_i32_0 : i32, i32
  }
  func.func @transform_2(%arg0: i32) -> (i32, i32) {
    %c0_i32 = arith.constant 0 : i32
    %c0_i32_0 = arith.constant 0 : i32
    %c0_i32_1 = arith.constant 0 : i32
    return %c0_i32, %c0_i32_0 : i32, i32
  }
  func.func @transform_3(%arg0: i32) -> (i32, i32) {
    %c0_i32 = arith.constant 0 : i32
    %c0_i32_0 = arith.constant 0 : i32
    %c0_i32_1 = arith.constant 0 : i32
    return %c0_i32, %c0_i32_0 : i32, i32
  }
  func.func @transform_4(%arg0: i32) -> (i32, i32) {
    %c0_i32 = arith.constant 0 : i32
    %c0_i32_0 = arith.constant 0 : i32
    %c0_i32_1 = arith.constant 0 : i32
    return %c0_i32, %c0_i32_0 : i32, i32
  }
  func.func @transform_5(%arg0: i32) -> (i32, i32) {
    %c0_i32 = arith.constant 0 : i32
    %c0_i32_0 = arith.constant 0 : i32
    %c0_i32_1 = arith.constant 0 : i32
    return %c0_i32, %c0_i32_0 : i32, i32
  }
  func.func @transform_6(%arg0: i32) -> (i32, i32) {
    %c0_i32 = arith.constant 0 : i32
    %c0_i32_0 = arith.constant 0 : i32
    %c0_i32_1 = arith.constant 0 : i32
    return %c0_i32, %c0_i32_0 : i32, i32
  }
  func.func @transform_7(%arg0: i32) -> (i32, i32) {
    %c0_i32 = arith.constant 0 : i32
    %c0_i32_0 = arith.constant 0 : i32
    %c0_i32_1 = arith.constant 0 : i32
    return %c0_i32, %c0_i32_0 : i32, i32
  }
  func.func @transform_8(%arg0: i32) -> (i32, i32) {
    %c0_i32 = arith.constant 0 : i32
    %c0_i32_0 = arith.constant 0 : i32
    %c0_i32_1 = arith.constant 0 : i32
    return %c0_i32, %c0_i32_0 : i32, i32
  }
  func.func @transform_9(%arg0: i32) -> (i32, i32) {
    %c0_i32 = arith.constant 0 : i32
    %c0_i32_0 = arith.constant 0 : i32
    %c0_i32_1 = arith.constant 0 : i32
    return %c0_i32, %c0_i32_0 : i32, i32
  }
  func.func @transform_10(%arg0: i32) -> (i32, i32, i32) {
    %c0_i32 = arith.constant 0 : i32
    %c0_i32_0 = arith.constant 0 : i32
    %c0_i32_1 = arith.constant 0 : i32
    %c0_i32_2 = arith.constant 0 : i32
    return %c0_i32, %c0_i32_0, %c0_i32_1 : i32, i32, i32
  }
}

</mosaic_0001>

<llo_original>
// kernel: tpu_custom_call.1
$region0: #{tpu_custom_call.1}
  #allocation0 [shape = 'u32[]', space=smem, size = 0x4, offset = 0x4, fixed_abs, tag = 'smem constant byte address 0x4 - core index']
  #allocation1 [shape = 'u32[144,128]{1,0:T(1,128)}', space=vmem, size = 0x12000, scoped, tag = 'internal scratch']
  #allocation2 [shape = 'f32[72,512]{1,0:T(8,128)}', space=vmem, size = 0x24000, scoped, tag = 'scratch operand']
  %s0 = inlined_call_operand.hbm [shape: f32[32,512], index: 0, kind: input, shape index: {}]
  %s1 = inlined_call_operand.vmem [shape: bf16[8,32], index: 1, kind: input, shape index: {}]
  %s2 = inlined_call_operand.vmem [shape: bf16[8,72], index: 2, kind: input, shape index: {}]
  %s3 = inlined_call_operand.vmem [shape: bf16[32,8], index: 3, kind: input, shape index: {}]
  %s4 = inlined_call_operand.vmem [shape: f32[8,3], index: 4, kind: input, shape index: {}]
  %s5 = inlined_call_operand.vmem [shape: f32[8,3], index: 5, kind: input, shape index: {}]
  %s6 = inlined_call_operand.vmem [shape: f32[32,3], index: 6, kind: input, shape index: {}]
  %s7 = inlined_call_operand.vmem [shape: f32[8,8], index: 7, kind: input, shape index: {}]
  %s8 = inlined_call_operand.vmem [shape: f32[32,32], index: 8, kind: input, shape index: {}]
  %s9 = inlined_call_operand.vmem [shape: f32[9,512], index: 9, kind: input, shape index: {}]
  %s10 = inlined_call_operand.hbm [shape: f32[2,32,256], index: 10, kind: output, shape index: {}]
  %s11 = sld [smem:[#allocation0]]
  $region54: #{tpu_custom_call.1} parent=0
    _
  %s13 = ssub.s32 1, %s11
  %s14 = scalar_select 0, %s13, %s11
  $region1: #{tpu_custom_call.1} parent=0
    #allocation3 [shape = 'u8[65536]{0}', space=vmem, size = 0x10000, scoped, tag = 'input window, operand 0, single buffered']
    #allocation4 [shape = 's32[1]{0}', space=sflag, size = 0x4, scoped, tag = 'scoped memory for tpu_custom_call.1']
    #allocation5 [shape = 's32[1]{0}', space=sflag, size = 0x4, scoped, tag = 'scoped memory for tpu_custom_call.1']
    #allocation6 [shape = 'u8[65536]{0}', space=vmem, size = 0x10000, scoped, tag = 'output window, operand 0, single buffered']
    %15 = vsyncpa [#allocation4], 0
    %16 = vsyncpa [#allocation5], 0
    // Predicated region
    $region2: #{tpu_custom_call.1} parent=1 // pred_check
      _
    $region3: #{tpu_custom_call.1} parent=1 // pred_check_branch
      %18 = sbr.rel (0) target = $region5
    $region4: #{tpu_custom_call.1} parent=1 // pred_region
      %s20 = ssub.s32 2048, 2048
      %21 = vsyncadd [#allocation4], %s20
      %s22 = sshll.u32 [#allocation3], 4
      %s23 = int_to_ptr.vmem [resolvable:$true] %s22
      %28 = dma.hbm_to_vmem [thread:$0]  %s0, 2048, %s23, [#allocation4], 512, 512, 32
    $region5: #{tpu_custom_call.1} parent=1 // pred_fallthru
      _
    // Predicated region
    $region6: #{tpu_custom_call.1} parent=1 // pred_check
      _
    $region7: #{tpu_custom_call.1} parent=1 // pred_check_branch
      %30 = sbr.rel (0) target = $region9
    $region8: #{tpu_custom_call.1} parent=1 // pred_region
      _
    $region9: #{tpu_custom_call.1} parent=1 // pred_fallthru
      _
    // Predicated region
    $region10: #{tpu_custom_call.1} parent=1 // pred_check
      _
    $region11: #{tpu_custom_call.1} parent=1 // pred_check_branch
      %32 = sbr.rel (0) target = $region13
    $region12: #{tpu_custom_call.1} parent=1 // pred_region
      _
    $region13: #{tpu_custom_call.1} parent=1 // pred_fallthru
      _
    // Predicated region
    $region14: #{tpu_custom_call.1} parent=1 // pred_check
      _
    $region15: #{tpu_custom_call.1} parent=1 // pred_check_branch
      %34 = sbr.rel (0) target = $region17
    $region16: #{tpu_custom_call.1} parent=1 // pred_region
      _
    $region17: #{tpu_custom_call.1} parent=1 // pred_fallthru
      _
    // Predicated region
    $region18: #{tpu_custom_call.1} parent=1 // pred_check
      _
    $region19: #{tpu_custom_call.1} parent=1 // pred_check_branch
      %36 = sbr.rel (0) target = $region21
    $region20: #{tpu_custom_call.1} parent=1 // pred_region
      _
    $region21: #{tpu_custom_call.1} parent=1 // pred_fallthru
      _
    // Predicated region
    $region22: #{tpu_custom_call.1} parent=1 // pred_check
      _
    $region23: #{tpu_custom_call.1} parent=1 // pred_check_branch
      %38 = sbr.rel (0) target = $region25
    $region24: #{tpu_custom_call.1} parent=1 // pred_region
      _
    $region25: #{tpu_custom_call.1} parent=1 // pred_fallthru
      _
    // Predicated region
    $region26: #{tpu_custom_call.1} parent=1 // pred_check
      _
    $region27: #{tpu_custom_call.1} parent=1 // pred_check_branch
      %40 = sbr.rel (0) target = $region29
    $region28: #{tpu_custom_call.1} parent=1 // pred_region
      _
    $region29: #{tpu_custom_call.1} parent=1 // pred_fallthru
      _
    // Predicated region
    $region30: #{tpu_custom_call.1} parent=1 // pred_check
      _
    $region31: #{tpu_custom_call.1} parent=1 // pred_check_branch
      %42 = sbr.rel (0) target = $region33
    $region32: #{tpu_custom_call.1} parent=1 // pred_region
      _
    $region33: #{tpu_custom_call.1} parent=1 // pred_fallthru
      _
    // Predicated region
    $region34: #{tpu_custom_call.1} parent=1 // pred_check
      _
    $region35: #{tpu_custom_call.1} parent=1 // pred_check_branch
      %44 = sbr.rel (0) target = $region37
    $region36: #{tpu_custom_call.1} parent=1 // pred_region
      _
    $region37: #{tpu_custom_call.1} parent=1 // pred_fallthru
      _
    // Predicated region
    $region38: #{tpu_custom_call.1} parent=1 // pred_check
      _
    $region39: #{tpu_custom_call.1} parent=1 // pred_check_branch
      %46 = sbr.rel (0) target = $region41
    $region40: #{tpu_custom_call.1} parent=1 // pred_region
      _
    $region41: #{tpu_custom_call.1} parent=1 // pred_fallthru
      _
    // Predicated region
    $region42: #{tpu_custom_call.1} parent=1 // pred_check
      _
    $region43: #{tpu_custom_call.1} parent=1 // pred_check_branch
      %48 = sbr.rel (0) target = $region45
    $region44: #{tpu_custom_call.1} parent=1 // pred_region
      %49 = dma.done [#allocation4], 2048
    $region45: #{tpu_custom_call.1} parent=1 // pred_fallthru
      _
    %v51 = vld [vmem:[%s1] sm:$0xf]
    %v52 = vld [vmem:[#allocation3] sm:$0xff]
    %v53 = vld [vmem:[#allocation3 + $0x8] sm:$0xff]
    %v54 = vld [vmem:[#allocation3 + $0x10] sm:$0xff]
    %v55 = vld [vmem:[#allocation3 + $0x18] sm:$0xff]
    %v56 = vld [vmem:[#allocation3 + $0x20] sm:$0xff]
    %v57 = vld [vmem:[#allocation3 + $0x28] sm:$0xff]
    %v58 = vld [vmem:[#allocation3 + $0x30] sm:$0xff]
    %v59 = vld [vmem:[#allocation3 + $0x38] sm:$0xff]
    %v60 = vld [vmem:[#allocation3 + $0x40] sm:$0xff]
    %v61 = vld [vmem:[#allocation3 + $0x48] sm:$0xff]
    %v62 = vld [vmem:[#allocation3 + $0x50] sm:$0xff]
    %v63 = vld [vmem:[#allocation3 + $0x58] sm:$0xff]
    %v64 = vld [vmem:[#allocation3 + $0x60] sm:$0xff]
    %v65 = vld [vmem:[#allocation3 + $0x68] sm:$0xff]
    %v66 = vld [vmem:[#allocation3 + $0x70] sm:$0xff]
    %v67 = vld [vmem:[#allocation3 + $0x78] sm:$0xff]
    %v68 = vpack.c.bf16 %v56, %v52
    %v69 = vpack.c.bf16 %v57, %v53
    %v70 = vpack.c.bf16 %v58, %v54
    %v71 = vpack.c.bf16 %v59, %v55
    %v72 = vpack.c.bf16 %v64, %v60
    %v73 = vpack.c.bf16 %v65, %v61
    %v74 = vpack.c.bf16 %v66, %v62
    %v75 = vpack.c.bf16 %v67, %v63
    %vm76 = vcmask 261120
    %v78 = vsel %vm76, %v51, 0
    %80 = vmatprep.subr.bf16.mxu0 %v69
    %81 = vmatpush1.bf16.msra.mxu0 %v68
    %82 = vmatprep.subr.bf16.mxu0 %v73
    %83 = vmatpush1.bf16.msra.mxu0 %v72
    %84 = vmatprep.subr.bf16.mxu0 0
    %85 = vmatpush1.bf16.msra.mxu0 0
    %86 = vmatprep.subr.bf16.mxu0 0
    %87 = vmatpush1.bf16.msra.mxu0 0
    %88 = vmatprep.subr.bf16.mxu0 0
    %89 = vmatpush1.bf16.msra.mxu0 0
    %90 = vmatprep.subr.bf16.mxu0 0
    %91 = vmatpush1.bf16.msra.mxu0 0
    %92 = vmatprep.subr.bf16.mxu0 0
    %93 = vmatpush1.bf16.msra.mxu0 0
    %94 = vmatprep.subr.bf16.mxu0 0
    %95 = vmatpush1.bf16.msra.mxu0 0
    %96 = vmatprep.subr.bf16.mxu0 0
    %97 = vmatpush1.bf16.msra.mxu0 0
    %98 = vmatprep.subr.bf16.mxu0 0
    %99 = vmatpush1.bf16.msra.mxu0 0
    %100 = vmatprep.subr.bf16.mxu0 0
    %101 = vmatpush1.bf16.msra.mxu0 0
    %102 = vmatprep.subr.bf16.mxu0 0
    %103 = vmatpush1.bf16.msra.mxu0 0
    %104 = vmatprep.subr.bf16.mxu0 0
    %105 = vmatpush1.bf16.msra.mxu0 0
    %106 = vmatprep.subr.bf16.mxu0 0
    %107 = vmatpush1.bf16.msra.mxu0 0
    %108 = vmatprep.subr.bf16.mxu0 0
    %109 = vmatpush1.bf16.msra.mxu0 0
    %110 = vmatprep.subr.bf16.mxu0 0
    %111 = vmatpush1.bf16.msra.mxu0 0
    %112 = vmatprep.mubr.bf16.mxu0 0
    %113 = vmatmul.mubr.bf16.gmra.mrb[0].mxu0 %v78
    %v114 = vpop.f32.mrb[0].mxu0
    %v115 = vadd.f32 0.0, %v114
    %v116 = vpop.f32.mrb[0].mxu0
    %v117 = vadd.f32 0.0, %v116
    %v118 = vpop.f32.mrb[0].mxu0
    %v119 = vpop.f32.mrb[0].mxu0
    %120 = vdwg.mxu0
    %121 = vmatprep.subr.bf16.mxu0 %v71
    %122 = vmatpush1.bf16.msra.mxu0 %v70
    %123 = vmatprep.subr.bf16.mxu0 %v75
    %124 = vmatpush1.bf16.msra.mxu0 %v74
    %125 = vmatprep.subr.bf16.mxu0 0
    %126 = vmatpush1.bf16.msra.mxu0 0
    %127 = vmatprep.subr.bf16.mxu0 0
    %128 = vmatpush1.bf16.msra.mxu0 0
    %129 = vmatprep.subr.bf16.mxu0 0
    %130 = vmatpush1.bf16.msra.mxu0 0
    %131 = vmatprep.subr.bf16.mxu0 0
    %132 = vmatpush1.bf16.msra.mxu0 0
    %133 = vmatprep.subr.bf16.mxu0 0
    %134 = vmatpush1.bf16.msra.mxu0 0
    %135 = vmatprep.subr.bf16.mxu0 0
    %136 = vmatpush1.bf16.msra.mxu0 0
    %137 = vmatprep.subr.bf16.mxu0 0
    %138 = vmatpush1.bf16.msra.mxu0 0
    %139 = vmatprep.subr.bf16.mxu0 0
    %140 = vmatpush1.bf16.msra.mxu0 0
    %141 = vmatprep.subr.bf16.mxu0 0
    %142 = vmatpush1.bf16.msra.mxu0 0
    %143 = vmatprep.subr.bf16.mxu0 0
    %144 = vmatpush1.bf16.msra.mxu0 0
    %145 = vmatprep.subr.bf16.mxu0 0
    %146 = vmatpush1.bf16.msra.mxu0 0
    %147 = vmatprep.subr.bf16.mxu0 0
    %148 = vmatpush1.bf16.msra.mxu0 0
    %149 = vmatprep.subr.bf16.mxu0 0
    %150 = vmatpush1.bf16.msra.mxu0 0
    %151 = vmatprep.subr.bf16.mxu0 0
    %152 = vmatpush1.bf16.msra.mxu0 0
    %153 = vmatprep.mubr.bf16.mxu0 0
    %154 = vmatmul.mubr.bf16.gmra.mrb[0].mxu0 %v78
    %v155 = vpop.f32.mrb[0].mxu0
    %v156 = vadd.f32 0.0, %v155
    %v157 = vpop.f32.mrb[0].mxu0
    %v158 = vadd.f32 0.0, %v157
    %v159 = vpop.f32.mrb[0].mxu0
    %v160 = vpop.f32.mrb[0].mxu0
    %161 = vdwg.mxu0
    %v162 = vld [vmem:[%s4] sm:$0xff]
    %v163 = vld [vmem:[%s7] sm:$0xff]
    %v164 = vadd.f32 %v115, %v117
    %165 = vadd.xlane.f32.xlu0 %v164
    %v166 = vpop.xlane.xlu0 %165
    %v167 = vmul.f32 %v115, %v115
    %v168 = vmul.f32 %v117, %v117
    %v169 = vadd.f32 %v167, %v168
    %170 = vadd.xlane.f32.xlu0 %v169
    %v171 = vpop.xlane.xlu0 %170
    %v172 = vmul.f32 %v162, 256.0
    %v173 = vadd.f32 %v166, %v172
    %v174 = vmul.f32 %v162, 2.0
    %v175 = vmul.f32 %v174, %v166
    %v176 = vadd.f32 %v171, %v175
    %v177 = vmul.f32 %v162, %v162
    %v178 = vmul.f32 %v177, 256.0
    %v179 = vadd.f32 %v176, %v178
    %v180 = vadd.f32 %v156, %v158
    %181 = vadd.xlane.f32.xlu0 %v180
    %v182 = vpop.xlane.xlu0 %181
    %v183 = vmul.f32 %v156, %v156
    %v184 = vmul.f32 %v158, %v158
    %v185 = vadd.f32 %v183, %v184
    %186 = vadd.xlane.f32.xlu0 %v185
    %v187 = vpop.xlane.xlu0 %186
    %v188 = vadd.f32 %v182, %v172
    %v189 = vmul.f32 %v174, %v182
    %v190 = vadd.f32 %v187, %v189
    %v191 = vadd.f32 %v190, %v178
    %193 = vrot.lane.b32.xlu0 %v188, 1
    %v194 = vpop.permute.xlu0 %193
    %197 = vrot.lane.b32.xlu0 %v179, 2
    %v198 = vpop.permute.xlu0 %197
    %201 = vrot.lane.b32.xlu0 %v191, 3
    %v202 = vpop.permute.xlu0 %201
    %vm204 = vcmask 7168
    %v205 = vsel %vm204, %v173, %v194
    %vm206 = vcmask 15360
    %v207 = vsel %vm206, %v205, %v198
    %vm208 = vcmask 23552
    %v209 = vsel %vm208, %v207, %v202
    %vm210 = vcmask 64512
    %v212 = vsel %vm210, %v163, 0
    %214 = vmatprep.subr.mxu0 0.0
    %215 = vmatpush1.msra.mxu0 %v209
    %216 = vmatprep.subr.mxu0 0.0
    %217 = vmatpush1.msra.mxu0 0.0
    %218 = vmatprep.subr.mxu0 0.0
    %219 = vmatpush1.msra.mxu0 0.0
    %220 = vmatprep.subr.mxu0 0.0
    %221 = vmatpush1.msra.mxu0 0.0
    %222 = vmatprep.subr.mxu0 0.0
    %223 = vmatpush1.msra.mxu0 0.0
    %224 = vmatprep.subr.mxu0 0.0
    %225 = vmatpush1.msra.mxu0 0.0
    %226 = vmatprep.subr.mxu0 0.0
    %227 = vmatpush1.msra.mxu0 0.0
    %228 = vmatprep.subr.mxu0 0.0
    %229 = vmatpush1.msra.mxu0 0.0
    %230 = vmatprep.subr.mxu0 0.0
    %231 = vmatpush1.msra.mxu0 0.0
    %232 = vmatprep.subr.mxu0 0.0
    %233 = vmatpush1.msra.mxu0 0.0
    %234 = vmatprep.subr.mxu0 0.0
    %235 = vmatpush1.msra.mxu0 0.0
    %236 = vmatprep.subr.mxu0 0.0
    %237 = vmatpush1.msra.mxu0 0.0
    %238 = vmatprep.subr.mxu0 0.0
    %239 = vmatpush1.msra.mxu0 0.0
    %240 = vmatprep.subr.mxu0 0.0
    %241 = vmatpush1.msra.mxu0 0.0
    %242 = vmatprep.subr.mxu0 0.0
    %243 = vmatpush1.msra.mxu0 0.0
    %244 = vmatprep.subr.mxu0 0.0
    %245 = vmatpush1.msra.mxu0 0.0
    %246 = vmatprep.subr.mxu0 0.0
    %247 = vmatpush1.msra.mxu0 0.0
    %248 = vmatprep.subr.mxu0 0.0
    %249 = vmatpush1.msra.mxu0 0.0
    %250 = vmatprep.subr.mxu0 0.0
    %251 = vmatpush1.msra.mxu0 0.0
    %252 = vmatprep.subr.mxu0 0.0
    %253 = vmatpush1.msra.mxu0 0.0
    %254 = vmatprep.subr.mxu0 0.0
    %255 = vmatpush1.msra.mxu0 0.0
    %256 = vmatprep.subr.mxu0 0.0
    %257 = vmatpush1.msra.mxu0 0.0
    %258 = vmatprep.subr.mxu0 0.0
    %259 = vmatpush1.msra.mxu0 0.0
    %260 = vmatprep.subr.mxu0 0.0
    %261 = vmatpush1.msra.mxu0 0.0
    %262 = vmatprep.subr.mxu0 0.0
    %263 = vmatpush1.msra.mxu0 0.0
    %264 = vmatprep.subr.mxu0 0.0
    %265 = vmatpush1.msra.mxu0 0.0
    %266 = vmatprep.subr.mxu0 0.0
    %267 = vmatpush1.msra.mxu0 0.0
    %268 = vmatprep.subr.mxu0 0.0
    %269 = vmatpush1.msra.mxu0 0.0
    %270 = vmatprep.subr.mxu0 0.0
    %271 = vmatpush1.msra.mxu0 0.0
    %272 = vmatprep.subr.mxu0 0.0
    %273 = vmatpush1.msra.mxu0 0.0
    %274 = vmatprep.subr.mxu0 0.0
    %275 = vmatpush1.msra.mxu0 0.0
    %276 = vmatprep.subr.mxu0 0.0
    %277 = vmatpush1.msra.mxu0 0.0
    %278 = vmatprep.mubr.f32.mxu0 0.0
    %279 = vmatmul.mubr.f32.gmra.mrb[0].mxu0 %v212
    %v280 = vpop.f32.mrb[0].mxu0
    %v281 = vadd.f32 0.0, %v280
    %v282 = vpop.f32.mrb[0].mxu0
    %283 = vdwg.mxu0
    %v284 = vmul.f32 %v281, %v281
    %286 = vrot.lane.b32.xlu0 %v284, 2
    %v287 = vpop.permute.xlu0 %286
    %v289 = vsub.f32 %v281, %v287
    %v290 = vadd.f32 %v289, 1e-05
    %v291 = vrsqrt.pop %v290
    %293 = vset.pattern.permute.xlu0 1
    %294 = vperm.xlu0 %293, %v162
    %v295 = vpop.permute.xlu0 %294
    %v297 = vmul.f32 %v295, %v291
    %298 = vset.pattern.permute.xlu0 0
    %299 = vperm.xlu0 %298, %v162
    %v300 = vpop.permute.xlu0 %299
    %v302 = vsub.f32 %v300, %v281
    %304 = vrot.lane.b32.xlu0 %v297, 126
    %v305 = vpop.permute.xlu0 %304
    %v307 = vmul.f32 %v302, %v305
    %308 = vset.pattern.permute.xlu0 2
    %309 = vperm.xlu0 %308, %v162
    %v310 = vpop.permute.xlu0 %309
    %v312 = vadd.f32 %v310, %v307
    %313 = vset.pattern.permute.xlu0 2
    %314 = vperm.xlu0 %313, %v297
    %v315 = vpop.permute.xlu0 %314
    %v317 = vmul.f32 %v115, %v315
    %v318 = vmul.f32 %v117, %v315
    %320 = vset.pattern.permute.xlu0 0
    %321 = vperm.xlu0 %320, %v312
    %v322 = vpop.permute.xlu0 %321
    %v324 = vadd.f32 %v317, %v322
    %v325 = vadd.f32 %v318, %v322
    %v326 = vmax.f32 %v324, 0.0
    %v327 = vmax.f32 %v325, 0.0
    %328 = vset.pattern.permute.xlu0 3
    %329 = vperm.xlu0 %328, %v297
    %v330 = vpop.permute.xlu0 %329
    %v332 = vmul.f32 %v156, %v330
    %v333 = vmul.f32 %v158, %v330
    %334 = vset.pattern.permute.xlu0 1
    %335 = vperm.xlu0 %334, %v312
    %v336 = vpop.permute.xlu0 %335
    %v338 = vadd.f32 %v332, %v336
    %v339 = vadd.f32 %v333, %v336
    %v340 = vmax.f32 %v338, 0.0
    %v341 = vmax.f32 %v339, 0.0
    %342 = vrot.lane.b32.xlu0 %v326, 17
    %v343 = vpop.permute.xlu0 %342
    %344 = vrot.lane.b32.xlu0 %v327, 17
    %v345 = vpop.permute.xlu0 %344
    %346 = vrot.lane.b32.xlu0 %v340, 17
    %v347 = vpop.permute.xlu0 %346
    %348 = vrot.lane.b32.xlu0 %v341, 17
    %v349 = vpop.permute.xlu0 %348
    %v350 = vlaneseq
    %v351 = vand.u32 %v350, 127
    %vm352 = vcmp.lt.s32.totalorder %v351, 17
    %v353 = vsel %vm352, %v347, %v349
    %v354 = vsel %vm352, %v345, %v347
    %v355 = vsel %vm352, %v343, %v345
    %v356 = vsel %vm352, %v349, %v343
    %v357 = vld [vmem:[%s9] ss:$8 sm:$0xf]
    %v359 = vlaneseq
    %v360 = vshrl.u32 %v359, 7
    %v361 = vsub.s32 0, %v360
    %v362 = vrot.slane %v357, %v361
    %v363 = vlaneseq
    %v364 = vshrl.u32 %v363, 7
    %v365 = vsub.s32 1, %v364
    %v366 = vrot.slane %v357, %v365
    %v367 = vlaneseq
    %v368 = vshrl.u32 %v367, 7
    %v369 = vsub.s32 2, %v368
    %v370 = vrot.slane %v357, %v369
    %v371 = vlaneseq
    %v372 = vshrl.u32 %v371, 7
    %v373 = vsub.s32 3, %v372
    %v374 = vrot.slane %v357, %v373
    %v379 = vmul.f32 %v356, %v362
    %v380 = vmul.f32 %v355, %v366
    %v381 = vmul.f32 %v354, %v370
    %v382 = vmul.f32 %v353, %v374
    %383 = vst [vmem:[#allocation2] sm:$0xff] %v379
    %384 = vst [vmem:[#allocation2 + $0x8] sm:$0xff] %v380
    %385 = vst [vmem:[#allocation2 + $0x10] sm:$0xff] %v381
    %386 = vst [vmem:[#allocation2 + $0x18] sm:$0xff] %v382
    %387 = vrot.lane.b32.xlu0 %v326, 16
    %v388 = vpop.permute.xlu0 %387
    %389 = vrot.lane.b32.xlu0 %v327, 16
    %v390 = vpop.permute.xlu0 %389
    %391 = vrot.lane.b32.xlu0 %v340, 16
    %v392 = vpop.permute.xlu0 %391
    %393 = vrot.lane.b32.xlu0 %v341, 16
    %v394 = vpop.permute.xlu0 %393
    %vm395 = vcmp.lt.s32.totalorder %v351, 16
    %v396 = vsel %vm395, %v392, %v394
    %v397 = vsel %vm395, %v390, %v392
    %v398 = vsel %vm395, %v388, %v390
    %v399 = vsel %vm395, %v394, %v388
    %s400 = scalar_lea.vmem %s9, 1
    %v401 = vld [vmem:[%s400] ss:$8 sm:$0xf]
    %v403 = vlaneseq
    %v404 = vshrl.u32 %v403, 7
    %v405 = vsub.s32 0, %v404
    %v406 = vrot.slane %v401, %v405
    %v407 = vlaneseq
    %v408 = vshrl.u32 %v407, 7
    %v409 = vsub.s32 1, %v408
    %v410 = vrot.slane %v401, %v409
    %v411 = vlaneseq
    %v412 = vshrl.u32 %v411, 7
    %v413 = vsub.s32 2, %v412
    %v414 = vrot.slane %v401, %v413
    %v415 = vlaneseq
    %v416 = vshrl.u32 %v415, 7
    %v417 = vsub.s32 3, %v416
    %v418 = vrot.slane %v401, %v417
    %v423 = vmul.f32 %v399, %v406
    %v424 = vmul.f32 %v398, %v410
    %v425 = vmul.f32 %v397, %v414
    %v426 = vmul.f32 %v396, %v418
    %427 = vst [vmem:[#allocation2 + $0x20] sm:$0xff] %v423
    %428 = vst [vmem:[#allocation2 + $0x28] sm:$0xff] %v424
    %429 = vst [vmem:[#allocation2 + $0x30] sm:$0xff] %v425
    %430 = vst [vmem:[#allocation2 + $0x38] sm:$0xff] %v426
    %431 = vrot.lane.b32.xlu0 %v326, 15
    %v432 = vpop.permute.xlu0 %431
    %433 = vrot.lane.b32.xlu0 %v327, 15
    %v434 = vpop.permute.xlu0 %433
    %435 = vrot.lane.b32.xlu0 %v340, 15
    %v436 = vpop.permute.xlu0 %435
    %437 = vrot.lane.b32.xlu0 %v341, 15
    %v438 = vpop.permute.xlu0 %437
    %vm439 = vcmp.lt.s32.totalorder %v351, 15
    %v440 = vsel %vm439, %v436, %v438
    %v441 = vsel %vm439, %v434, %v436
    %v442 = vsel %vm439, %v432, %v434
    %v443 = vsel %vm439, %v438, %v432
    %s444 = scalar_lea.vmem %s9, 2
    %v445 = vld [vmem:[%s444] ss:$8 sm:$0xf]
    %v447 = vlaneseq
    %v448 = vshrl.u32 %v447, 7
    %v449 = vsub.s32 0, %v448
    %v450 = vrot.slane %v445, %v449
    %v451 = vlaneseq
    %v452 = vshrl.u32 %v451, 7
    %v453 = vsub.s32 1, %v452
    %v454 = vrot.slane %v445, %v453
    %v455 = vlaneseq
    %v456 = vshrl.u32 %v455, 7
    %v457 = vsub.s32 2, %v456
    %v458 = vrot.slane %v445, %v457
    %v459 = vlaneseq
    %v460 = vshrl.u32 %v459, 7
    %v461 = vsub.s32 3, %v460
    %v462 = vrot.slane %v445, %v461
    %v467 = vmul.f32 %v443, %v450
    %v468 = vmul.f32 %v442, %v454
    %v469 = vmul.f32 %v441, %v458
    %v470 = vmul.f32 %v440, %v462
    %471 = vst [vmem:[#allocation2 + $0x40] sm:$0xff] %v467
    %472 = vst [vmem:[#allocation2 + $0x48] sm:$0xff] %v468
    %473 = vst [vmem:[#allocation2 + $0x50] sm:$0xff] %v469
    %474 = vst [vmem:[#allocation2 + $0x58] sm:$0xff] %v470
    %475 = vrot.lane.b32.xlu0 %v326, 1
    %v476 = vpop.permute.xlu0 %475
    %477 = vrot.lane.b32.xlu0 %v327, 1
    %v478 = vpop.permute.xlu0 %477
    %479 = vrot.lane.b32.xlu0 %v340, 1
    %v480 = vpop.permute.xlu0 %479
    %481 = vrot.lane.b32.xlu0 %v341, 1
    %v482 = vpop.permute.xlu0 %481
    %vm483 = vcmp.lt.s32.totalorder %v351, 1
    %v484 = vsel %vm483, %v480, %v482
    %v485 = vsel %vm483, %v478, %v480
    %v486 = vsel %vm483, %v476, %v478
    %v487 = vsel %vm483, %v482, %v476
    %s488 = scalar_lea.vmem %s9, 3
    %v489 = vld [vmem:[%s488] ss:$8 sm:$0xf]
    %v491 = vlaneseq
    %v492 = vshrl.u32 %v491, 7
    %v493 = vsub.s32 0, %v492
    %v494 = vrot.slane %v489, %v493
    %v495 = vlaneseq
    %v496 = vshrl.u32 %v495, 7
    %v497 = vsub.s32 1, %v496
    %v498 = vrot.slane %v489, %v497
    %v499 = vlaneseq
    %v500 = vshrl.u32 %v499, 7
    %v501 = vsub.s32 2, %v500
    %v502 = vrot.slane %v489, %v501
    %v503 = vlaneseq
    %v504 = vshrl.u32 %v503, 7
    %v505 = vsub.s32 3, %v504
    %v506 = vrot.slane %v489, %v505
    %v511 = vmul.f32 %v487, %v494
    %v512 = vmul.f32 %v486, %v498
    %v513 = vmul.f32 %v485, %v502
    %v514 = vmul.f32 %v484, %v506
    %515 = vst [vmem:[#allocation2 + $0x60] sm:$0xff] %v511
    %516 = vst [vmem:[#allocation2 + $0x68] sm:$0xff] %v512
    %517 = vst [vmem:[#allocation2 + $0x70] sm:$0xff] %v513
    %518 = vst [vmem:[#allocation2 + $0x78] sm:$0xff] %v514
    %519 = vst [vmem:[#allocation2 + $0x80] sm:$0xff] %v326
    %520 = vst [vmem:[#allocation2 + $0x88] sm:$0xff] %v327
    %521 = vst [vmem:[#allocation2 + $0x90] sm:$0xff] %v340
    %522 = vst [vmem:[#allocation2 + $0x98] sm:$0xff] %v341
    %523 = vrot.lane.b32.xlu0 %v326, 127
    %v524 = vpop.permute.xlu0 %523
    %525 = vrot.lane.b32.xlu0 %v327, 127
    %v526 = vpop.permute.xlu0 %525
    %527 = vrot.lane.b32.xlu0 %v340, 127
    %v528 = vpop.permute.xlu0 %527
    %529 = vrot.lane.b32.xlu0 %v341, 127
    %v530 = vpop.permute.xlu0 %529
    %vm531 = vcmp.lt.s32.totalorder %v351, 127
    %v532 = vsel %vm531, %v528, %v530
    %v533 = vsel %vm531, %v526, %v528
    %v534 = vsel %vm531, %v524, %v526
    %v535 = vsel %vm531, %v530, %v524
    %s536 = scalar_lea.vmem %s9, 5
    %v537 = vld [vmem:[%s536] ss:$8 sm:$0xf]
    %v539 = vlaneseq
    %v540 = vshrl.u32 %v539, 7
    %v541 = vsub.s32 0, %v540
    %v542 = vrot.slane %v537, %v541
    %v543 = vlaneseq
    %v544 = vshrl.u32 %v543, 7
    %v545 = vsub.s32 1, %v544
    %v546 = vrot.slane %v537, %v545
    %v547 = vlaneseq
    %v548 = vshrl.u32 %v547, 7
    %v549 = vsub.s32 2, %v548
    %v550 = vrot.slane %v537, %v549
    %v551 = vlaneseq
    %v552 = vshrl.u32 %v551, 7
    %v553 = vsub.s32 3, %v552
    %v554 = vrot.slane %v537, %v553
    %v559 = vmul.f32 %v534, %v542
    %v560 = vmul.f32 %v533, %v546
    %v561 = vmul.f32 %v532, %v550
    %v562 = vmul.f32 %v535, %v554
    %563 = vst [vmem:[#allocation2 + $0xa0] sm:$0xff] %v559
    %564 = vst [vmem:[#allocation2 + $0xa8] sm:$0xff] %v560
    %565 = vst [vmem:[#allocation2 + $0xb0] sm:$0xff] %v561
    %566 = vst [vmem:[#allocation2 + $0xb8] sm:$0xff] %v562
    %567 = vrot.lane.b32.xlu0 %v326, 113
    %v568 = vpop.permute.xlu0 %567
    %569 = vrot.lane.b32.xlu0 %v327, 113
    %v570 = vpop.permute.xlu0 %569
    %571 = vrot.lane.b32.xlu0 %v340, 113
    %v572 = vpop.permute.xlu0 %571
    %573 = vrot.lane.b32.xlu0 %v341, 113
    %v574 = vpop.permute.xlu0 %573
    %vm575 = vcmp.lt.s32.totalorder %v351, 113
    %v576 = vsel %vm575, %v572, %v574
    %v577 = vsel %vm575, %v570, %v572
    %v578 = vsel %vm575, %v568, %v570
    %v579 = vsel %vm575, %v574, %v568
    %s580 = scalar_lea.vmem %s9, 6
    %v581 = vld [vmem:[%s580] ss:$8 sm:$0xf]
    %v583 = vlaneseq
    %v584 = vshrl.u32 %v583, 7
    %v585 = vsub.s32 0, %v584
    %v586 = vrot.slane %v581, %v585
    %v587 = vlaneseq
    %v588 = vshrl.u32 %v587, 7
    %v589 = vsub.s32 1, %v588
    %v590 = vrot.slane %v581, %v589
    %v591 = vlaneseq
    %v592 = vshrl.u32 %v591, 7
    %v593 = vsub.s32 2, %v592
    %v594 = vrot.slane %v581, %v593
    %v595 = vlaneseq
    %v596 = vshrl.u32 %v595, 7
    %v597 = vsub.s32 3, %v596
    %v598 = vrot.slane %v581, %v597
    %v603 = vmul.f32 %v578, %v586
    %v604 = vmul.f32 %v577, %v590
    %v605 = vmul.f32 %v576, %v594
    %v606 = vmul.f32 %v579, %v598
    %607 = vst [vmem:[#allocation2 + $0xc0] sm:$0xff] %v603
    %608 = vst [vmem:[#allocation2 + $0xc8] sm:$0xff] %v604
    %609 = vst [vmem:[#allocation2 + $0xd0] sm:$0xff] %v605
    %610 = vst [vmem:[#allocation2 + $0xd8] sm:$0xff] %v606
    %611 = vrot.lane.b32.xlu0 %v326, 112
    %v612 = vpop.permute.xlu0 %611
    %613 = vrot.lane.b32.xlu0 %v327, 112
    %v614 = vpop.permute.xlu0 %613
    %615 = vrot.lane.b32.xlu0 %v340, 112
    %v616 = vpop.permute.xlu0 %615
    %617 = vrot.lane.b32.xlu0 %v341, 112
    %v618 = vpop.permute.xlu0 %617
    %vm619 = vcmp.lt.s32.totalorder %v351, 112
    %v620 = vsel %vm619, %v616, %v618
    %v621 = vsel %vm619, %v614, %v616
    %v622 = vsel %vm619, %v612, %v614
    %v623 = vsel %vm619, %v618, %v612
    %s624 = scalar_lea.vmem %s9, 7
    %v625 = vld [vmem:[%s624] ss:$8 sm:$0xf]
    %v627 = vlaneseq
    %v628 = vshrl.u32 %v627, 7
    %v629 = vsub.s32 0, %v628
    %v630 = vrot.slane %v625, %v629
    %v631 = vlaneseq
    %v632 = vshrl.u32 %v631, 7
    %v633 = vsub.s32 1, %v632
    %v634 = vrot.slane %v625, %v633
    %v635 = vlaneseq
    %v636 = vshrl.u32 %v635, 7
    %v637 = vsub.s32 2, %v636
    %v638 = vrot.slane %v625, %v637
    %v639 = vlaneseq
    %v640 = vshrl.u32 %v639, 7
    %v641 = vsub.s32 3, %v640
    %v642 = vrot.slane %v625, %v641
    %v647 = vmul.f32 %v622, %v630
    %v648 = vmul.f32 %v621, %v634
    %v649 = vmul.f32 %v620, %v638
    %v650 = vmul.f32 %v623, %v642
    %651 = vst [vmem:[#allocation2 + $0xe0] sm:$0xff] %v647
    %652 = vst [vmem:[#allocation2 + $0xe8] sm:$0xff] %v648
    %653 = vst [vmem:[#allocation2 + $0xf0] sm:$0xff] %v649
    %654 = vst [vmem:[#allocation2 + $0xf8] sm:$0xff] %v650
    %655 = vrot.lane.b32.xlu0 %v326, 111
    %v656 = vpop.permute.xlu0 %655
    %657 = vrot.lane.b32.xlu0 %v327, 111
    %v658 = vpop.permute.xlu0 %657
    %659 = vrot.lane.b32.xlu0 %v340, 111
    %v660 = vpop.permute.xlu0 %659
    %661 = vrot.lane.b32.xlu0 %v341, 111
    %v662 = vpop.permute.xlu0 %661
    %vm663 = vcmp.lt.s32.totalorder %v351, 111
    %v664 = vsel %vm663, %v660, %v662
    %v665 = vsel %vm663, %v658, %v660
    %v666 = vsel %vm663, %v656, %v658
    %v667 = vsel %vm663, %v662, %v656
    %s668 = scalar_lea.vmem %s9, 32
    %v669 = vld [vmem:[%s668] ss:$8 sm:$0xf]
    %v671 = vlaneseq
    %v672 = vshrl.u32 %v671, 7
    %v673 = vsub.s32 0, %v672
    %v674 = vrot.slane %v669, %v673
    %v675 = vlaneseq
    %v676 = vshrl.u32 %v675, 7
    %v677 = vsub.s32 1, %v676
    %v678 = vrot.slane %v669, %v677
    %v679 = vlaneseq
    %v680 = vshrl.u32 %v679, 7
    %v681 = vsub.s32 2, %v680
    %v682 = vrot.slane %v669, %v681
    %v683 = vlaneseq
    %v684 = vshrl.u32 %v683, 7
    %v685 = vsub.s32 3, %v684
    %v686 = vrot.slane %v669, %v685
    %v691 = vmul.f32 %v666, %v674
    %v692 = vmul.f32 %v665, %v678
    %v693 = vmul.f32 %v664, %v682
    %v694 = vmul.f32 %v667, %v686
    %695 = vst [vmem:[#allocation2 + $0x100] sm:$0xff] %v691
    %696 = vst [vmem:[#allocation2 + $0x108] sm:$0xff] %v692
    %697 = vst [vmem:[#allocation2 + $0x110] sm:$0xff] %v693
    %698 = vst [vmem:[#allocation2 + $0x118] sm:$0xff] %v694
    %v699 = vld [vmem:[%s2] sm:$0xf]
    %v700 = vld [vmem:[#allocation2] sm:$0xff]
    %v701 = vld [vmem:[#allocation2 + $0x8] sm:$0xff]
    %v702 = vld [vmem:[#allocation2 + $0x10] sm:$0xff]
    %v703 = vld [vmem:[#allocation2 + $0x18] sm:$0xff]
    %v704 = vld [vmem:[#allocation2 + $0x20] sm:$0xff]
    %v705 = vld [vmem:[#allocation2 + $0x28] sm:$0xff]
    %v706 = vld [vmem:[#allocation2 + $0x30] sm:$0xff]
    %v707 = vld [vmem:[#allocation2 + $0x38] sm:$0xff]
    %v708 = vld [vmem:[#allocation2 + $0x40] sm:$0xff]
    %v709 = vld [vmem:[#allocation2 + $0x48] sm:$0xff]
    %v710 = vld [vmem:[#allocation2 + $0x50] sm:$0xff]
    %v711 = vld [vmem:[#allocation2 + $0x58] sm:$0xff]
    %v712 = vld [vmem:[#allocation2 + $0x60] sm:$0xff]
    %v713 = vld [vmem:[#allocation2 + $0x68] sm:$0xff]
    %v714 = vld [vmem:[#allocation2 + $0x70] sm:$0xff]
    %v715 = vld [vmem:[#allocation2 + $0x78] sm:$0xff]
    %v716 = vld [vmem:[#allocation2 + $0x80] sm:$0xff]
    %v717 = vld [vmem:[#allocation2 + $0x88] sm:$0xff]
    %v718 = vld [vmem:[#allocation2 + $0x90] sm:$0xff]
    %v719 = vld [vmem:[#allocation2 + $0x98] sm:$0xff]
    %v720 = vld [vmem:[#allocation2 + $0xa0] sm:$0xff]
    %v721 = vld [vmem:[#allocation2 + $0xa8] sm:$0xff]
    %v722 = vld [vmem:[#allocation2 + $0xb0] sm:$0xff]
    %v723 = vld [vmem:[#allocation2 + $0xb8] sm:$0xff]
    %v724 = vld [vmem:[#allocation2 + $0xc0] sm:$0xff]
    %v725 = vld [vmem:[#allocation2 + $0xc8] sm:$0xff]
    %v726 = vld [vmem:[#allocation2 + $0xd0] sm:$0xff]
    %v727 = vld [vmem:[#allocation2 + $0xd8] sm:$0xff]
    %v728 = vld [vmem:[#allocation2 + $0xe0] sm:$0xff]
    %v729 = vld [vmem:[#allocation2 + $0xe8] sm:$0xff]
    %v730 = vld [vmem:[#allocation2 + $0xf0] sm:$0xff]
    %v731 = vld [vmem:[#allocation2 + $0xf8] sm:$0xff]
    %v732 = vld [vmem:[#allocation2 + $0x100] sm:$0xff]
    %v733 = vld [vmem:[#allocation2 + $0x108] sm:$0xff]
    %v734 = vld [vmem:[#allocation2 + $0x110] sm:$0xff]
    %v735 = vld [vmem:[#allocation2 + $0x118] sm:$0xff]
    %v736 = vpack.c.bf16 %v704, %v700
    %v737 = vpack.c.bf16 %v705, %v701
    %v738 = vpack.c.bf16 %v706, %v702
    %v739 = vpack.c.bf16 %v707, %v703
    %v740 = vpack.c.bf16 %v712, %v708
    %v741 = vpack.c.bf16 %v713, %v709
    %v742 = vpack.c.bf16 %v714, %v710
    %v743 = vpack.c.bf16 %v715, %v711
    %v744 = vpack.c.bf16 %v720, %v716
    %v745 = vpack.c.bf16 %v721, %v717
    %v746 = vpack.c.bf16 %v722, %v718
    %v747 = vpack.c.bf16 %v723, %v719
    %v748 = vpack.c.bf16 %v728, %v724
    %v749 = vpack.c.bf16 %v729, %v725
    %v750 = vpack.c.bf16 %v730, %v726
    %v751 = vpack.c.bf16 %v731, %v727
    %v752 = vpack.c.bf16 %v732, %v732
    %v753 = vpack.c.bf16 %v733, %v733
    %v754 = vpack.c.bf16 %v734, %v734
    %v755 = vpack.c.bf16 %v735, %v735
    %vm756 = vcmask 588800
    %v758 = vsel %vm756, %v699, 0
    %vm760 = vcmask 1043456
    %v762 = vsel %vm760, %v752, 0
    %v765 = vsel %vm760, %v753, 0
    %v768 = vsel %vm760, %v754, 0
    %v771 = vsel %vm760, %v755, 0
    %773 = vmatprep.subr.bf16.mxu0 %v737
    %774 = vmatpush1.bf16.msra.mxu0 %v736
    %775 = vmatprep.subr.bf16.mxu0 %v741
    %776 = vmatpush1.bf16.msra.mxu0 %v740
    %777 = vmatprep.subr.bf16.mxu0 %v745
    %778 = vmatpush1.bf16.msra.mxu0 %v744
    %779 = vmatprep.subr.bf16.mxu0 %v749
    %780 = vmatpush1.bf16.msra.mxu0 %v748
    %781 = vmatprep.subr.bf16.mxu0 %v765
    %782 = vmatpush1.bf16.msra.mxu0 %v762
    %783 = vmatprep.subr.bf16.mxu0 0
    %784 = vmatpush1.bf16.msra.mxu0 0
    %785 = vmatprep.subr.bf16.mxu0 0
    %786 = vmatpush1.bf16.msra.mxu0 0
    %787 = vmatprep.subr.bf16.mxu0 0
    %788 = vmatpush1.bf16.msra.mxu0 0
    %789 = vmatprep.subr.bf16.mxu0 0
    %790 = vmatpush1.bf16.msra.mxu0 0
    %791 = vmatprep.subr.bf16.mxu0 0
    %792 = vmatpush1.bf16.msra.mxu0 0
    %793 = vmatprep.subr.bf16.mxu0 0
    %794 = vmatpush1.bf16.msra.mxu0 0
    %795 = vmatprep.subr.bf16.mxu0 0
    %796 = vmatpush1.bf16.msra.mxu0 0
    %797 = vmatprep.subr.bf16.mxu0 0
    %798 = vmatpush1.bf16.msra.mxu0 0
    %799 = vmatprep.subr.bf16.mxu0 0
    %800 = vmatpush1.bf16.msra.mxu0 0
    %801 = vmatprep.subr.bf16.mxu0 0
    %802 = vmatpush1.bf16.msra.mxu0 0
    %803 = vmatprep.subr.bf16.mxu0 0
    %804 = vmatpush1.bf16.msra.mxu0 0
    %805 = vmatprep.mubr.bf16.mxu0 0
    %806 = vmatmul.mubr.bf16.gmra.mrb[0].mxu0 %v758
    %v807 = vpop.f32.mrb[0].mxu0
    %v808 = vadd.f32 0.0, %v807
    %v809 = vpop.f32.mrb[0].mxu0
    %v810 = vadd.f32 0.0, %v809
    %v811 = vpop.f32.mrb[0].mxu0
    %v812 = vpop.f32.mrb[0].mxu0
    %813 = vdwg.mxu0
    %814 = vmatprep.subr.bf16.mxu0 %v739
    %815 = vmatpush1.bf16.msra.mxu0 %v738
    %816 = vmatprep.subr.bf16.mxu0 %v743
    %817 = vmatpush1.bf16.msra.mxu0 %v742
    %818 = vmatprep.subr.bf16.mxu0 %v747
    %819 = vmatpush1.bf16.msra.mxu0 %v746
    %820 = vmatprep.subr.bf16.mxu0 %v751
    %821 = vmatpush1.bf16.msra.mxu0 %v750
    %822 = vmatprep.subr.bf16.mxu0 %v771
    %823 = vmatpush1.bf16.msra.mxu0 %v768
    %824 = vmatprep.subr.bf16.mxu0 0
    %825 = vmatpush1.bf16.msra.mxu0 0
    %826 = vmatprep.subr.bf16.mxu0 0
    %827 = vmatpush1.bf16.msra.mxu0 0
    %828 = vmatprep.subr.bf16.mxu0 0
    %829 = vmatpush1.bf16.msra.mxu0 0
    %830 = vmatprep.subr.bf16.mxu0 0
    %831 = vmatpush1.bf16.msra.mxu0 0
    %832 = vmatprep.subr.bf16.mxu0 0
    %833 = vmatpush1.bf16.msra.mxu0 0
    %834 = vmatprep.subr.bf16.mxu0 0
    %835 = vmatpush1.bf16.msra.mxu0 0
    %836 = vmatprep.subr.bf16.mxu0 0
    %837 = vmatpush1.bf16.msra.mxu0 0
    %838 = vmatprep.subr.bf16.mxu0 0
    %839 = vmatpush1.bf16.msra.mxu0 0
    %840 = vmatprep.subr.bf16.mxu0 0
    %841 = vmatpush1.bf16.msra.mxu0 0
    %842 = vmatprep.subr.bf16.mxu0 0
    %843 = vmatpush1.bf16.msra.mxu0 0
    %844 = vmatprep.subr.bf16.mxu0 0
    %845 = vmatpush1.bf16.msra.mxu0 0
    %846 = vmatprep.mubr.bf16.mxu0 0
    %847 = vmatmul.mubr.bf16.gmra.mrb[0].mxu0 %v758
    %v848 = vpop.f32.mrb[0].mxu0
    %v849 = vadd.f32 0.0, %v848
    %v850 = vpop.f32.mrb[0].mxu0
    %v851 = vadd.f32 0.0, %v850
    %v852 = vpop.f32.mrb[0].mxu0
    %v853 = vpop.f32.mrb[0].mxu0
    %854 = vdwg.mxu0
    %v855 = vld [vmem:[%s5] sm:$0xff]
    %v856 = vld [vmem:[%s7] sm:$0xff]
    %v857 = vadd.f32 %v808, %v810
    %858 = vadd.xlane.f32.xlu0 %v857
    %v859 = vpop.xlane.xlu0 %858
    %v860 = vmul.f32 %v808, %v808
    %v861 = vmul.f32 %v810, %v810
    %v862 = vadd.f32 %v860, %v861
    %863 = vadd.xlane.f32.xlu0 %v862
    %v864 = vpop.xlane.xlu0 %863
    %v865 = vmul.f32 %v855, 256.0
    %v866 = vadd.f32 %v859, %v865
    %v867 = vmul.f32 %v855, 2.0
    %v868 = vmul.f32 %v867, %v859
    %v869 = vadd.f32 %v864, %v868
    %v870 = vmul.f32 %v855, %v855
    %v871 = vmul.f32 %v870, 256.0
    %v872 = vadd.f32 %v869, %v871
    %v873 = vadd.f32 %v849, %v851
    %874 = vadd.xlane.f32.xlu0 %v873
    %v875 = vpop.xlane.xlu0 %874
    %v876 = vmul.f32 %v849, %v849
    %v877 = vmul.f32 %v851, %v851
    %v878 = vadd.f32 %v876, %v877
    %879 = vadd.xlane.f32.xlu0 %v878
    %v880 = vpop.xlane.xlu0 %879
    %v881 = vadd.f32 %v875, %v865
    %v882 = vmul.f32 %v867, %v875
    %v883 = vadd.f32 %v880, %v882
    %v884 = vadd.f32 %v883, %v871
    %886 = vrot.lane.b32.xlu0 %v881, 1
    %v887 = vpop.permute.xlu0 %886
    %890 = vrot.lane.b32.xlu0 %v872, 2
    %v891 = vpop.permute.xlu0 %890
    %894 = vrot.lane.b32.xlu0 %v884, 3
    %v895 = vpop.permute.xlu0 %894
    %v897 = vsel %vm204, %v866, %v887
    %v898 = vsel %vm206, %v897, %v891
    %v899 = vsel %vm208, %v898, %v895
    %v901 = vsel %vm210, %v856, 0
    %903 = vmatprep.subr.mxu0 0.0
    %904 = vmatpush1.msra.mxu0 %v899
    %905 = vmatprep.subr.mxu0 0.0
    %906 = vmatpush1.msra.mxu0 0.0
    %907 = vmatprep.subr.mxu0 0.0
    %908 = vmatpush1.msra.mxu0 0.0
    %909 = vmatprep.subr.mxu0 0.0
    %910 = vmatpush1.msra.mxu0 0.0
    %911 = vmatprep.subr.mxu0 0.0
    %912 = vmatpush1.msra.mxu0 0.0
    %913 = vmatprep.subr.mxu0 0.0
    %914 = vmatpush1.msra.mxu0 0.0
    %915 = vmatprep.subr.mxu0 0.0
    %916 = vmatpush1.msra.mxu0 0.0
    %917 = vmatprep.subr.mxu0 0.0
    %918 = vmatpush1.msra.mxu0 0.0
    %919 = vmatprep.subr.mxu0 0.0
    %920 = vmatpush1.msra.mxu0 0.0
    %921 = vmatprep.subr.mxu0 0.0
    %922 = vmatpush1.msra.mxu0 0.0
    %923 = vmatprep.subr.mxu0 0.0
    %924 = vmatpush1.msra.mxu0 0.0
    %925 = vmatprep.subr.mxu0 0.0
    %926 = vmatpush1.msra.mxu0 0.0
    %927 = vmatprep.subr.mxu0 0.0
    %928 = vmatpush1.msra.mxu0 0.0
    %929 = vmatprep.subr.mxu0 0.0
    %930 = vmatpush1.msra.mxu0 0.0
    %931 = vmatprep.subr.mxu0 0.0
    %932 = vmatpush1.msra.mxu0 0.0
    %933 = vmatprep.subr.mxu0 0.0
    %934 = vmatpush1.msra.mxu0 0.0
    %935 = vmatprep.subr.mxu0 0.0
    %936 = vmatpush1.msra.mxu0 0.0
    %937 = vmatprep.subr.mxu0 0.0
    %938 = vmatpush1.msra.mxu0 0.0
    %939 = vmatprep.subr.mxu0 0.0
    %940 = vmatpush1.msra.mxu0 0.0
    %941 = vmatprep.subr.mxu0 0.0
    %942 = vmatpush1.msra.mxu0 0.0
    %943 = vmatprep.subr.mxu0 0.0
    %944 = vmatpush1.msra.mxu0 0.0
    %945 = vmatprep.subr.mxu0 0.0
    %946 = vmatpush1.msra.mxu0 0.0
    %947 = vmatprep.subr.mxu0 0.0
    %948 = vmatpush1.msra.mxu0 0.0
    %949 = vmatprep.subr.mxu0 0.0
    %950 = vmatpush1.msra.mxu0 0.0
    %951 = vmatprep.subr.mxu0 0.0
    %952 = vmatpush1.msra.mxu0 0.0
    %953 = vmatprep.subr.mxu0 0.0
    %954 = vmatpush1.msra.mxu0 0.0
    %955 = vmatprep.subr.mxu0 0.0
    %956 = vmatpush1.msra.mxu0 0.0
    %957 = vmatprep.subr.mxu0 0.0
    %958 = vmatpush1.msra.mxu0 0.0
    %959 = vmatprep.subr.mxu0 0.0
    %960 = vmatpush1.msra.mxu0 0.0
    %961 = vmatprep.subr.mxu0 0.0
    %962 = vmatpush1.msra.mxu0 0.0
    %963 = vmatprep.subr.mxu0 0.0
    %964 = vmatpush1.msra.mxu0 0.0
    %965 = vmatprep.subr.mxu0 0.0
    %966 = vmatpush1.msra.mxu0 0.0
    %967 = vmatprep.mubr.f32.mxu0 0.0
    %968 = vmatmul.mubr.f32.gmra.mrb[0].mxu0 %v901
    %v969 = vpop.f32.mrb[0].mxu0
    %v970 = vadd.f32 0.0, %v969
    %v971 = vpop.f32.mrb[0].mxu0
    %972 = vdwg.mxu0
    %v973 = vmul.f32 %v970, %v970
    %975 = vrot.lane.b32.xlu0 %v973, 2
    %v976 = vpop.permute.xlu0 %975
    %v978 = vsub.f32 %v970, %v976
    %v979 = vadd.f32 %v978, 1e-05
    %v980 = vrsqrt.pop %v979
    %982 = vset.pattern.permute.xlu0 1
    %983 = vperm.xlu0 %982, %v855
    %v984 = vpop.permute.xlu0 %983
    %v986 = vmul.f32 %v984, %v980
    %987 = vset.pattern.permute.xlu0 0
    %988 = vperm.xlu0 %987, %v855
    %v989 = vpop.permute.xlu0 %988
    %v991 = vsub.f32 %v989, %v970
    %993 = vrot.lane.b32.xlu0 %v986, 126
    %v994 = vpop.permute.xlu0 %993
    %v996 = vmul.f32 %v991, %v994
    %997 = vset.pattern.permute.xlu0 2
    %998 = vperm.xlu0 %997, %v855
    %v999 = vpop.permute.xlu0 %998
    %v1001 = vadd.f32 %v999, %v996
    %1002 = vset.pattern.permute.xlu0 2
    %1003 = vperm.xlu0 %1002, %v986
    %v1004 = vpop.permute.xlu0 %1003
    %v1006 = vmul.f32 %v808, %v1004
    %v1007 = vmul.f32 %v810, %v1004
    %1009 = vset.pattern.permute.xlu0 0
    %1010 = vperm.xlu0 %1009, %v1001
    %v1011 = vpop.permute.xlu0 %1010
    %v1013 = vadd.f32 %v1006, %v1011
    %v1014 = vadd.f32 %v1007, %v1011
    %v1015 = vmax.f32 %v1013, 0.0
    %v1016 = vmax.f32 %v1014, 0.0
    %v1017 = vpack.c.bf16 %v1015, %v1015
    %v1018 = vpack.c.bf16 %v1016, %v1016
    %1019 = vset.pattern.permute.xlu0 3
    %1020 = vperm.xlu0 %1019, %v986
    %v1021 = vpop.permute.xlu0 %1020
    %v1023 = vmul.f32 %v849, %v1021
    %v1024 = vmul.f32 %v851, %v1021
    %1025 = vset.pattern.permute.xlu0 1
    %1026 = vperm.xlu0 %1025, %v1001
    %v1027 = vpop.permute.xlu0 %1026
    %v1029 = vadd.f32 %v1023, %v1027
    %v1030 = vadd.f32 %v1024, %v1027
    %v1031 = vmax.f32 %v1029, 0.0
    %v1032 = vmax.f32 %v1030, 0.0
    %v1033 = vpack.c.bf16 %v1031, %v1031
    %v1034 = vpack.c.bf16 %v1032, %v1032
    %v1035 = vld [vmem:[%s3] sm:$0xf]
    %v1036 = vld [vmem:[%s3 + $0x4] sm:$0xf]
    %v1037 = vld [vmem:[%s3 + $0x8] sm:$0xf]
    %v1038 = vld [vmem:[%s3 + $0xc] sm:$0xf]
    %v1043 = vunpack.c.l.b16 %v1035
    %v1044 = vunpack.c.l.b16 %v1036
    %v1045 = vunpack.c.l.b16 %v1037
    %v1046 = vunpack.c.l.b16 %v1038
    %v1047 = vpack.c.b16 %v1044, %v1043
    %v1048 = vpack.c.b16 %v1046, %v1045
    %v1050 = vsel %vm210, %v1047, 0
    %v1053 = vsel %vm210, %v1048, 0
    %v1056 = vsel %vm760, %v1017, 0
    %v1059 = vsel %vm760, %v1018, 0
    %v1062 = vsel %vm760, %v1033, 0
    %v1065 = vsel %vm760, %v1034, 0
    %1067 = vmatprep.subr.bf16.mxu0 %v1059
    %1068 = vmatpush1.bf16.msra.mxu0 %v1056
    %1069 = vmatprep.subr.bf16.mxu0 0
    %1070 = vmatpush1.bf16.msra.mxu0 0
    %1071 = vmatprep.subr.bf16.mxu0 0
    %1072 = vmatpush1.bf16.msra.mxu0 0
    %1073 = vmatprep.subr.bf16.mxu0 0
    %1074 = vmatpush1.bf16.msra.mxu0 0
    %1075 = vmatprep.subr.bf16.mxu0 0
    %1076 = vmatpush1.bf16.msra.mxu0 0
    %1077 = vmatprep.subr.bf16.mxu0 0
    %1078 = vmatpush1.bf16.msra.mxu0 0
    %1079 = vmatprep.subr.bf16.mxu0 0
    %1080 = vmatpush1.bf16.msra.mxu0 0
    %1081 = vmatprep.subr.bf16.mxu0 0
    %1082 = vmatpush1.bf16.msra.mxu0 0
    %1083 = vmatprep.subr.bf16.mxu0 0
    %1084 = vmatpush1.bf16.msra.mxu0 0
    %1085 = vmatprep.subr.bf16.mxu0 0
    %1086 = vmatpush1.bf16.msra.mxu0 0
    %1087 = vmatprep.subr.bf16.mxu0 0
    %1088 = vmatpush1.bf16.msra.mxu0 0
    %1089 = vmatprep.subr.bf16.mxu0 0
    %1090 = vmatpush1.bf16.msra.mxu0 0
    %1091 = vmatprep.subr.bf16.mxu0 0
    %1092 = vmatpush1.bf16.msra.mxu0 0
    %1093 = vmatprep.subr.bf16.mxu0 0
    %1094 = vmatpush1.bf16.msra.mxu0 0
    %1095 = vmatprep.subr.bf16.mxu0 0
    %1096 = vmatpush1.bf16.msra.mxu0 0
    %1097 = vmatprep.subr.bf16.mxu0 0
    %1098 = vmatpush1.bf16.msra.mxu0 0
    %1099 = vmatprep.mubr.bf16.mxu0 0
    %1100 = vmatmul.mubr.bf16.gmra.mrb[0].mxu0 %v1050
    %v1101 = vpop.f32.mrb[0].mxu0
    %v1102 = vadd.f32 0.0, %v1101
    %v1103 = vpop.f32.mrb[0].mxu0
    %v1104 = vadd.f32 0.0, %v1103
    %v1105 = vpop.f32.mrb[0].mxu0
    %v1106 = vadd.f32 0.0, %v1105
    %v1107 = vpop.f32.mrb[0].mxu0
    %v1108 = vadd.f32 0.0, %v1107
    %1109 = vmatprep.mubr.bf16.mxu0 0
    %1110 = vmatmul.mubr.bf16.gmra.mrb[0].mxu0 %v1053
    %v1111 = vpop.f32.mrb[0].mxu0
    %v1112 = vadd.f32 0.0, %v1111
    %v1113 = vpop.f32.mrb[0].mxu0
    %v1114 = vadd.f32 0.0, %v1113
    %v1115 = vpop.f32.mrb[0].mxu0
    %v1116 = vadd.f32 0.0, %v1115
    %v1117 = vpop.f32.mrb[0].mxu0
    %v1118 = vadd.f32 0.0, %v1117
    %1119 = vdwg.mxu0
    %1120 = vmatprep.subr.bf16.mxu0 %v1065
    %1121 = vmatpush1.bf16.msra.mxu0 %v1062
    %1122 = vmatprep.subr.bf16.mxu0 0
    %1123 = vmatpush1.bf16.msra.mxu0 0
    %1124 = vmatprep.subr.bf16.mxu0 0
    %1125 = vmatpush1.bf16.msra.mxu0 0
    %1126 = vmatprep.subr.bf16.mxu0 0
    %1127 = vmatpush1.bf16.msra.mxu0 0
    %1128 = vmatprep.subr.bf16.mxu0 0
    %1129 = vmatpush1.bf16.msra.mxu0 0
    %1130 = vmatprep.subr.bf16.mxu0 0
    %1131 = vmatpush1.bf16.msra.mxu0 0
    %1132 = vmatprep.subr.bf16.mxu0 0
    %1133 = vmatpush1.bf16.msra.mxu0 0
    %1134 = vmatprep.subr.bf16.mxu0 0
    %1135 = vmatpush1.bf16.msra.mxu0 0
    %1136 = vmatprep.subr.bf16.mxu0 0
    %1137 = vmatpush1.bf16.msra.mxu0 0
    %1138 = vmatprep.subr.bf16.mxu0 0
    %1139 = vmatpush1.bf16.msra.mxu0 0
    %1140 = vmatprep.subr.bf16.mxu0 0
    %1141 = vmatpush1.bf16.msra.mxu0 0
    %1142 = vmatprep.subr.bf16.mxu0 0
    %1143 = vmatpush1.bf16.msra.mxu0 0
    %1144 = vmatprep.subr.bf16.mxu0 0
    %1145 = vmatpush1.bf16.msra.mxu0 0
    %1146 = vmatprep.subr.bf16.mxu0 0
    %1147 = vmatpush1.bf16.msra.mxu0 0
    %1148 = vmatprep.subr.bf16.mxu0 0
    %1149 = vmatpush1.bf16.msra.mxu0 0
    %1150 = vmatprep.subr.bf16.mxu0 0
    %1151 = vmatpush1.bf16.msra.mxu0 0
    %1152 = vmatprep.mubr.bf16.mxu0 0
    %1153 = vmatmul.mubr.bf16.gmra.mrb[0].mxu0 %v1050
    %v1154 = vpop.f32.mrb[0].mxu0
    %v1155 = vadd.f32 0.0, %v1154
    %v1156 = vpop.f32.mrb[0].mxu0
    %v1157 = vadd.f32 0.0, %v1156
    %v1158 = vpop.f32.mrb[0].mxu0
    %v1159 = vadd.f32 0.0, %v1158
    %v1160 = vpop.f32.mrb[0].mxu0
    %v1161 = vadd.f32 0.0, %v1160
    %1162 = vmatprep.mubr.bf16.mxu0 0
    %1163 = vmatmul.mubr.bf16.gmra.mrb[0].mxu0 %v1053
    %v1164 = vpop.f32.mrb[0].mxu0
    %v1165 = vadd.f32 0.0, %v1164
    %v1166 = vpop.f32.mrb[0].mxu0
    %v1167 = vadd.f32 0.0, %v1166
    %v1168 = vpop.f32.mrb[0].mxu0
    %v1169 = vadd.f32 0.0, %v1168
    %v1170 = vpop.f32.mrb[0].mxu0
    %v1171 = vadd.f32 0.0, %v1170
    %1172 = vdwg.mxu0
    %v1173 = vld [vmem:[%s6] sm:$0xff]
    %v1174 = vld [vmem:[%s6 + $0x8] sm:$0xff]
    %v1175 = vld [vmem:[%s6 + $0x10] sm:$0xff]
    %v1176 = vld [vmem:[%s6 + $0x18] sm:$0xff]
    %v1177 = vld [vmem:[%s8] sm:$0xff]
    %v1178 = vld [vmem:[%s8 + $0x8] sm:$0xff]
    %v1179 = vld [vmem:[%s8 + $0x10] sm:$0xff]
    %v1180 = vld [vmem:[%s8 + $0x18] sm:$0xff]
    %v1181 = vadd.f32 %v1102, %v1104
    %1182 = vadd.xlane.f32.xlu0 %v1181
    %v1183 = vpop.xlane.xlu0 %1182
    %v1184 = vadd.f32 %v1106, %v1108
    %1185 = vadd.xlane.f32.xlu0 %v1184
    %v1186 = vpop.xlane.xlu0 %1185
    %v1187 = vadd.f32 %v1112, %v1114
    %1188 = vadd.xlane.f32.xlu0 %v1187
    %v1189 = vpop.xlane.xlu0 %1188
    %v1190 = vadd.f32 %v1116, %v1118
    %1191 = vadd.xlane.f32.xlu0 %v1190
    %v1192 = vpop.xlane.xlu0 %1191
    %v1193 = vmul.f32 %v1102, %v1102
    %v1194 = vmul.f32 %v1104, %v1104
    %v1195 = vmul.f32 %v1106, %v1106
    %v1196 = vmul.f32 %v1108, %v1108
    %v1197 = vmul.f32 %v1112, %v1112
    %v1198 = vmul.f32 %v1114, %v1114
    %v1199 = vmul.f32 %v1116, %v1116
    %v1200 = vmul.f32 %v1118, %v1118
    %v1201 = vadd.f32 %v1193, %v1194
    %1202 = vadd.xlane.f32.xlu0 %v1201
    %v1203 = vpop.xlane.xlu0 %1202
    %v1204 = vadd.f32 %v1195, %v1196
    %1205 = vadd.xlane.f32.xlu0 %v1204
    %v1206 = vpop.xlane.xlu0 %1205
    %v1207 = vadd.f32 %v1197, %v1198
    %1208 = vadd.xlane.f32.xlu0 %v1207
    %v1209 = vpop.xlane.xlu0 %1208
    %v1210 = vadd.f32 %v1199, %v1200
    %1211 = vadd.xlane.f32.xlu0 %v1210
    %v1212 = vpop.xlane.xlu0 %1211
    %v1213 = vmul.f32 %v1173, 256.0
    %v1214 = vmul.f32 %v1174, 256.0
    %v1215 = vmul.f32 %v1175, 256.0
    %v1216 = vmul.f32 %v1176, 256.0
    %v1217 = vadd.f32 %v1183, %v1213
    %v1218 = vadd.f32 %v1186, %v1214
    %v1219 = vadd.f32 %v1189, %v1215
    %v1220 = vadd.f32 %v1192, %v1216
    %v1221 = vmul.f32 %v1173, 2.0
    %v1222 = vmul.f32 %v1174, 2.0
    %v1223 = vmul.f32 %v1175, 2.0
    %v1224 = vmul.f32 %v1176, 2.0
    %v1225 = vmul.f32 %v1221, %v1183
    %v1226 = vmul.f32 %v1222, %v1186
    %v1227 = vmul.f32 %v1223, %v1189
    %v1228 = vmul.f32 %v1224, %v1192
    %v1229 = vadd.f32 %v1203, %v1225
    %v1230 = vadd.f32 %v1206, %v1226
    %v1231 = vadd.f32 %v1209, %v1227
    %v1232 = vadd.f32 %v1212, %v1228
    %v1233 = vmul.f32 %v1173, %v1173
    %v1234 = vmul.f32 %v1174, %v1174
    %v1235 = vmul.f32 %v1175, %v1175
    %v1236 = vmul.f32 %v1176, %v1176
    %v1237 = vmul.f32 %v1233, 256.0
    %v1238 = vmul.f32 %v1234, 256.0
    %v1239 = vmul.f32 %v1235, 256.0
    %v1240 = vmul.f32 %v1236, 256.0
    %v1241 = vadd.f32 %v1229, %v1237
    %v1242 = vadd.f32 %v1230, %v1238
    %v1243 = vadd.f32 %v1231, %v1239
    %v1244 = vadd.f32 %v1232, %v1240
    %v1245 = vadd.f32 %v1155, %v1157
    %1246 = vadd.xlane.f32.xlu0 %v1245
    %v1247 = vpop.xlane.xlu0 %1246
    %v1248 = vadd.f32 %v1159, %v1161
    %1249 = vadd.xlane.f32.xlu0 %v1248
    %v1250 = vpop.xlane.xlu0 %1249
    %v1251 = vadd.f32 %v1165, %v1167
    %1252 = vadd.xlane.f32.xlu0 %v1251
    %v1253 = vpop.xlane.xlu0 %1252
    %v1254 = vadd.f32 %v1169, %v1171
    %1255 = vadd.xlane.f32.xlu0 %v1254
    %v1256 = vpop.xlane.xlu0 %1255
    %v1257 = vmul.f32 %v1155, %v1155
    %v1258 = vmul.f32 %v1157, %v1157
    %v1259 = vmul.f32 %v1159, %v1159
    %v1260 = vmul.f32 %v1161, %v1161
    %v1261 = vmul.f32 %v1165, %v1165
    %v1262 = vmul.f32 %v1167, %v1167
    %v1263 = vmul.f32 %v1169, %v1169
    %v1264 = vmul.f32 %v1171, %v1171
    %v1265 = vadd.f32 %v1257, %v1258
    %1266 = vadd.xlane.f32.xlu0 %v1265
    %v1267 = vpop.xlane.xlu0 %1266
    %v1268 = vadd.f32 %v1259, %v1260
    %1269 = vadd.xlane.f32.xlu0 %v1268
    %v1270 = vpop.xlane.xlu0 %1269
    %v1271 = vadd.f32 %v1261, %v1262
    %1272 = vadd.xlane.f32.xlu0 %v1271
    %v1273 = vpop.xlane.xlu0 %1272
    %v1274 = vadd.f32 %v1263, %v1264
    %1275 = vadd.xlane.f32.xlu0 %v1274
    %v1276 = vpop.xlane.xlu0 %1275
    %v1277 = vadd.f32 %v1247, %v1213
    %v1278 = vadd.f32 %v1250, %v1214
    %v1279 = vadd.f32 %v1253, %v1215
    %v1280 = vadd.f32 %v1256, %v1216
    %v1281 = vmul.f32 %v1221, %v1247
    %v1282 = vmul.f32 %v1222, %v1250
    %v1283 = vmul.f32 %v1223, %v1253
    %v1284 = vmul.f32 %v1224, %v1256
    %v1285 = vadd.f32 %v1267, %v1281
    %v1286 = vadd.f32 %v1270, %v1282
    %v1287 = vadd.f32 %v1273, %v1283
    %v1288 = vadd.f32 %v1276, %v1284
    %v1289 = vadd.f32 %v1285, %v1237
    %v1290 = vadd.f32 %v1286, %v1238
    %v1291 = vadd.f32 %v1287, %v1239
    %v1292 = vadd.f32 %v1288, %v1240
    %1297 = vrot.lane.b32.xlu0 %v1277, 1
    %v1298 = vpop.permute.xlu0 %1297
    %1299 = vrot.lane.b32.xlu0 %v1278, 1
    %v1300 = vpop.permute.xlu0 %1299
    %1301 = vrot.lane.b32.xlu0 %v1279, 1
    %v1302 = vpop.permute.xlu0 %1301
    %1303 = vrot.lane.b32.xlu0 %v1280, 1
    %v1304 = vpop.permute.xlu0 %1303
    %1313 = vrot.lane.b32.xlu0 %v1241, 2
    %v1314 = vpop.permute.xlu0 %1313
    %1315 = vrot.lane.b32.xlu0 %v1242, 2
    %v1316 = vpop.permute.xlu0 %1315
    %1317 = vrot.lane.b32.xlu0 %v1243, 2
    %v1318 = vpop.permute.xlu0 %1317
    %1319 = vrot.lane.b32.xlu0 %v1244, 2
    %v1320 = vpop.permute.xlu0 %1319
    %1329 = vrot.lane.b32.xlu0 %v1289, 3
    %v1330 = vpop.permute.xlu0 %1329
    %1331 = vrot.lane.b32.xlu0 %v1290, 3
    %v1332 = vpop.permute.xlu0 %1331
    %1333 = vrot.lane.b32.xlu0 %v1291, 3
    %v1334 = vpop.permute.xlu0 %1333
    %1335 = vrot.lane.b32.xlu0 %v1292, 3
    %v1336 = vpop.permute.xlu0 %1335
    %v1341 = vsel %vm204, %v1217, %v1298
    %v1342 = vsel %vm204, %v1218, %v1300
    %v1343 = vsel %vm204, %v1219, %v1302
    %v1344 = vsel %vm204, %v1220, %v1304
    %v1345 = vsel %vm206, %v1341, %v1314
    %v1346 = vsel %vm206, %v1342, %v1316
    %v1347 = vsel %vm206, %v1343, %v1318
    %v1348 = vsel %vm206, %v1344, %v1320
    %v1349 = vsel %vm208, %v1345, %v1330
    %v1350 = vsel %vm208, %v1346, %v1332
    %v1351 = vsel %vm208, %v1347, %v1334
    %v1352 = vsel %vm208, %v1348, %v1336
    %v1354 = vsel %vm76, %v1177, 0
    %v1357 = vsel %vm76, %v1178, 0
    %v1360 = vsel %vm76, %v1179, 0
    %v1363 = vsel %vm76, %v1180, 0
    %1365 = vmatprep.subr.mxu0 0.0
    %1366 = vmatpush1.msra.mxu0 %v1349
    %1367 = vmatprep.subr.mxu0 0.0
    %1368 = vmatpush1.msra.mxu0 %v1350
    %1369 = vmatprep.subr.mxu0 0.0
    %1370 = vmatpush1.msra.mxu0 %v1351
    %1371 = vmatprep.subr.mxu0 0.0
    %1372 = vmatpush1.msra.mxu0 %v1352
    %1373 = vmatprep.subr.mxu0 0.0
    %1374 = vmatpush1.msra.mxu0 0.0
    %1375 = vmatprep.subr.mxu0 0.0
    %1376 = vmatpush1.msra.mxu0 0.0
    %1377 = vmatprep.subr.mxu0 0.0
    %1378 = vmatpush1.msra.mxu0 0.0
    %1379 = vmatprep.subr.mxu0 0.0
    %1380 = vmatpush1.msra.mxu0 0.0
    %1381 = vmatprep.subr.mxu0 0.0
    %1382 = vmatpush1.msra.mxu0 0.0
    %1383 = vmatprep.subr.mxu0 0.0
    %1384 = vmatpush1.msra.mxu0 0.0
    %1385 = vmatprep.subr.mxu0 0.0
    %1386 = vmatpush1.msra.mxu0 0.0
    %1387 = vmatprep.subr.mxu0 0.0
    %1388 = vmatpush1.msra.mxu0 0.0
    %1389 = vmatprep.subr.mxu0 0.0
    %1390 = vmatpush1.msra.mxu0 0.0
    %1391 = vmatprep.subr.mxu0 0.0
    %1392 = vmatpush1.msra.mxu0 0.0
    %1393 = vmatprep.subr.mxu0 0.0
    %1394 = vmatpush1.msra.mxu0 0.0
    %1395 = vmatprep.subr.mxu0 0.0
    %1396 = vmatpush1.msra.mxu0 0.0
    %1397 = vmatprep.subr.mxu0 0.0
    %1398 = vmatpush1.msra.mxu0 0.0
    %1399 = vmatprep.subr.mxu0 0.0
    %1400 = vmatpush1.msra.mxu0 0.0
    %1401 = vmatprep.subr.mxu0 0.0
    %1402 = vmatpush1.msra.mxu0 0.0
    %1403 = vmatprep.subr.mxu0 0.0
    %1404 = vmatpush1.msra.mxu0 0.0
    %1405 = vmatprep.subr.mxu0 0.0
    %1406 = vmatpush1.msra.mxu0 0.0
    %1407 = vmatprep.subr.mxu0 0.0
    %1408 = vmatpush1.msra.mxu0 0.0
    %1409 = vmatprep.subr.mxu0 0.0
    %1410 = vmatpush1.msra.mxu0 0.0
    %1411 = vmatprep.subr.mxu0 0.0
    %1412 = vmatpush1.msra.mxu0 0.0
    %1413 = vmatprep.subr.mxu0 0.0
    %1414 = vmatpush1.msra.mxu0 0.0
    %1415 = vmatprep.subr.mxu0 0.0
    %1416 = vmatpush1.msra.mxu0 0.0
    %1417 = vmatprep.subr.mxu0 0.0
    %1418 = vmatpush1.msra.mxu0 0.0
    %1419 = vmatprep.subr.mxu0 0.0
    %1420 = vmatpush1.msra.mxu0 0.0
    %1421 = vmatprep.subr.mxu0 0.0
    %1422 = vmatpush1.msra.mxu0 0.0
    %1423 = vmatprep.subr.mxu0 0.0
    %1424 = vmatpush1.msra.mxu0 0.0
    %1425 = vmatprep.subr.mxu0 0.0
    %1426 = vmatpush1.msra.mxu0 0.0
    %1427 = vmatprep.subr.mxu0 0.0
    %1428 = vmatpush1.msra.mxu0 0.0
    %1429 = vmatprep.mubr.f32.mxu0 0.0
    %1430 = vmatmul.mubr.f32.gmra.mrb[0].mxu0 %v1354
    %v1431 = vpop.f32.mrb[0].mxu0
    %v1432 = vadd.f32 0.0, %v1431
    %v1433 = vpop.f32.mrb[0].mxu0
    %1434 = vmatprep.mubr.f32.mxu0 0.0
    %1435 = vmatmul.mubr.f32.gmra.mrb[0].mxu0 %v1357
    %v1436 = vpop.f32.mrb[0].mxu0
    %v1437 = vadd.f32 0.0, %v1436
    %v1438 = vpop.f32.mrb[0].mxu0
    %1439 = vmatprep.mubr.f32.mxu0 0.0
    %1440 = vmatmul.mubr.f32.gmra.mrb[0].mxu0 %v1360
    %v1441 = vpop.f32.mrb[0].mxu0
    %v1442 = vadd.f32 0.0, %v1441
    %v1443 = vpop.f32.mrb[0].mxu0
    %1444 = vmatprep.mubr.f32.mxu0 0.0
    %1445 = vmatmul.mubr.f32.gmra.mrb[0].mxu0 %v1363
    %v1446 = vpop.f32.mrb[0].mxu0
    %v1447 = vadd.f32 0.0, %v1446
    %v1448 = vpop.f32.mrb[0].mxu0
    %1449 = vdwg.mxu0
    %v1450 = vmul.f32 %v1432, %v1432
    %v1451 = vmul.f32 %v1437, %v1437
    %v1452 = vmul.f32 %v1442, %v1442
    %v1453 = vmul.f32 %v1447, %v1447
    %1458 = vrot.lane.b32.xlu0 %v1450, 2
    %v1459 = vpop.permute.xlu0 %1458
    %1460 = vrot.lane.b32.xlu0 %v1451, 2
    %v1461 = vpop.permute.xlu0 %1460
    %1462 = vrot.lane.b32.xlu0 %v1452, 2
    %v1463 = vpop.permute.xlu0 %1462
    %1464 = vrot.lane.b32.xlu0 %v1453, 2
    %v1465 = vpop.permute.xlu0 %1464
    %v1470 = vsub.f32 %v1432, %v1459
    %v1471 = vsub.f32 %v1437, %v1461
    %v1472 = vsub.f32 %v1442, %v1463
    %v1473 = vsub.f32 %v1447, %v1465
    %v1474 = vadd.f32 %v1470, 1e-05
    %v1475 = vadd.f32 %v1471, 1e-05
    %v1476 = vadd.f32 %v1472, 1e-05
    %v1477 = vadd.f32 %v1473, 1e-05
    %v1478 = vrsqrt.pop %v1474
    %v1479 = vrsqrt.pop %v1475
    %v1480 = vrsqrt.pop %v1476
    %v1481 = vrsqrt.pop %v1477
    %1483 = vset.pattern.permute.xlu0 1
    %1484 = vperm.xlu0 %1483, %v1173
    %v1485 = vpop.permute.xlu0 %1484
    %1488 = vset.pattern.permute.xlu0 1
    %1489 = vperm.xlu0 %1488, %v1174
    %v1490 = vpop.permute.xlu0 %1489
    %1493 = vset.pattern.permute.xlu0 1
    %1494 = vperm.xlu0 %1493, %v1175
    %v1495 = vpop.permute.xlu0 %1494
    %1498 = vset.pattern.permute.xlu0 1
    %1499 = vperm.xlu0 %1498, %v1176
    %v1500 = vpop.permute.xlu0 %1499
    %v1502 = vmul.f32 %v1485, %v1478
    %v1503 = vmul.f32 %v1490, %v1479
    %v1504 = vmul.f32 %v1495, %v1480
    %v1505 = vmul.f32 %v1500, %v1481
    %1506 = vset.pattern.permute.xlu0 0
    %1507 = vperm.xlu0 %1506, %v1173
    %v1508 = vpop.permute.xlu0 %1507
    %1510 = vset.pattern.permute.xlu0 0
    %1511 = vperm.xlu0 %1510, %v1174
    %v1512 = vpop.permute.xlu0 %1511
    %1514 = vset.pattern.permute.xlu0 0
    %1515 = vperm.xlu0 %1514, %v1175
    %v1516 = vpop.permute.xlu0 %1515
    %1518 = vset.pattern.permute.xlu0 0
    %1519 = vperm.xlu0 %1518, %v1176
    %v1520 = vpop.permute.xlu0 %1519
    %v1522 = vsub.f32 %v1508, %v1432
    %v1523 = vsub.f32 %v1512, %v1437
    %v1524 = vsub.f32 %v1516, %v1442
    %v1525 = vsub.f32 %v1520, %v1447
    %1530 = vrot.lane.b32.xlu0 %v1502, 126
    %v1531 = vpop.permute.xlu0 %1530
    %1532 = vrot.lane.b32.xlu0 %v1503, 126
    %v1533 = vpop.permute.xlu0 %1532
    %1534 = vrot.lane.b32.xlu0 %v1504, 126
    %v1535 = vpop.permute.xlu0 %1534
    %1536 = vrot.lane.b32.xlu0 %v1505, 126
    %v1537 = vpop.permute.xlu0 %1536
    %v1542 = vmul.f32 %v1522, %v1531
    %v1543 = vmul.f32 %v1523, %v1533
    %v1544 = vmul.f32 %v1524, %v1535
    %v1545 = vmul.f32 %v1525, %v1537
    %1546 = vset.pattern.permute.xlu0 2
    %1547 = vperm.xlu0 %1546, %v1173
    %v1548 = vpop.permute.xlu0 %1547
    %1550 = vset.pattern.permute.xlu0 2
    %1551 = vperm.xlu0 %1550, %v1174
    %v1552 = vpop.permute.xlu0 %1551
    %1554 = vset.pattern.permute.xlu0 2
    %1555 = vperm.xlu0 %1554, %v1175
    %v1556 = vpop.permute.xlu0 %1555
    %1558 = vset.pattern.permute.xlu0 2
    %1559 = vperm.xlu0 %1558, %v1176
    %v1560 = vpop.permute.xlu0 %1559
    %v1562 = vadd.f32 %v1548, %v1542
    %v1563 = vadd.f32 %v1552, %v1543
    %v1564 = vadd.f32 %v1556, %v1544
    %v1565 = vadd.f32 %v1560, %v1545
    %1566 = vset.pattern.permute.xlu0 2
    %1567 = vperm.xlu0 %1566, %v1502
    %v1568 = vpop.permute.xlu0 %1567
    %1570 = vset.pattern.permute.xlu0 2
    %1571 = vperm.xlu0 %1570, %v1503
    %v1572 = vpop.permute.xlu0 %1571
    %1574 = vset.pattern.permute.xlu0 2
    %1575 = vperm.xlu0 %1574, %v1504
    %v1576 = vpop.permute.xlu0 %1575
    %1578 = vset.pattern.permute.xlu0 2
    %1579 = vperm.xlu0 %1578, %v1505
    %v1580 = vpop.permute.xlu0 %1579
    %v1582 = vmul.f32 %v1102, %v1568
    %v1583 = vmul.f32 %v1104, %v1568
    %v1584 = vmul.f32 %v1106, %v1572
    %v1585 = vmul.f32 %v1108, %v1572
    %v1586 = vmul.f32 %v1112, %v1576
    %v1587 = vmul.f32 %v1114, %v1576
    %v1588 = vmul.f32 %v1116, %v1580
    %v1589 = vmul.f32 %v1118, %v1580
    %1591 = vset.pattern.permute.xlu0 0
    %1592 = vperm.xlu0 %1591, %v1562
    %v1593 = vpop.permute.xlu0 %1592
    %1596 = vset.pattern.permute.xlu0 0
    %1597 = vperm.xlu0 %1596, %v1563
    %v1598 = vpop.permute.xlu0 %1597
    %1601 = vset.pattern.permute.xlu0 0
    %1602 = vperm.xlu0 %1601, %v1564
    %v1603 = vpop.permute.xlu0 %1602
    %1606 = vset.pattern.permute.xlu0 0
    %1607 = vperm.xlu0 %1606, %v1565
    %v1608 = vpop.permute.xlu0 %1607
    %v1610 = vadd.f32 %v1582, %v1593
    %v1611 = vadd.f32 %v1583, %v1593
    %v1612 = vadd.f32 %v1584, %v1598
    %v1613 = vadd.f32 %v1585, %v1598
    %v1614 = vadd.f32 %v1586, %v1603
    %v1615 = vadd.f32 %v1587, %v1603
    %v1616 = vadd.f32 %v1588, %v1608
    %v1617 = vadd.f32 %v1589, %v1608
    %v1618 = vmax.f32 %v1610, 0.0
    %v1619 = vmax.f32 %v1611, 0.0
    %v1620 = vmax.f32 %v1612, 0.0
    %v1621 = vmax.f32 %v1613, 0.0
    %v1622 = vmax.f32 %v1614, 0.0
    %v1623 = vmax.f32 %v1615, 0.0
    %v1624 = vmax.f32 %v1616, 0.0
    %v1625 = vmax.f32 %v1617, 0.0
    %v1626 = vld [vmem:[#allocation3] sm:$0xff]
    %v1627 = vld [vmem:[#allocation3 + $0x8] sm:$0xff]
    %v1628 = vld [vmem:[#allocation3 + $0x20] sm:$0xff]
    %v1629 = vld [vmem:[#allocation3 + $0x28] sm:$0xff]
    %v1630 = vld [vmem:[#allocation3 + $0x40] sm:$0xff]
    %v1631 = vld [vmem:[#allocation3 + $0x48] sm:$0xff]
    %v1632 = vld [vmem:[#allocation3 + $0x60] sm:$0xff]
    %v1633 = vld [vmem:[#allocation3 + $0x68] sm:$0xff]
    %v1634 = vadd.f32 %v1626, %v1618
    %v1635 = vadd.f32 %v1627, %v1619
    %v1636 = vadd.f32 %v1628, %v1620
    %v1637 = vadd.f32 %v1629, %v1621
    %v1638 = vadd.f32 %v1630, %v1622
    %v1639 = vadd.f32 %v1631, %v1623
    %v1640 = vadd.f32 %v1632, %v1624
    %v1641 = vadd.f32 %v1633, %v1625
    %v1642 = vmax.f32 %v1634, 0.0
    %v1643 = vmax.f32 %v1635, 0.0
    %v1644 = vmax.f32 %v1636, 0.0
    %v1645 = vmax.f32 %v1637, 0.0
    %v1646 = vmax.f32 %v1638, 0.0
    %v1647 = vmax.f32 %v1639, 0.0
    %v1648 = vmax.f32 %v1640, 0.0
    %v1649 = vmax.f32 %v1641, 0.0
    %1650 = vst [vmem:[#allocation6] sm:$0xff] %v1642
    %1651 = vst [vmem:[#allocation6 + $0x8] sm:$0xff] %v1643
    %1652 = vst [vmem:[#allocation6 + $0x10] sm:$0xff] %v1644
    %1653 = vst [vmem:[#allocation6 + $0x18] sm:$0xff] %v1645
    %1654 = vst [vmem:[#allocation6 + $0x20] sm:$0xff] %v1646
    %1655 = vst [vmem:[#allocation6 + $0x28] sm:$0xff] %v1647
    %1656 = vst [vmem:[#allocation6 + $0x30] sm:$0xff] %v1648
    %1657 = vst [vmem:[#allocation6 + $0x38] sm:$0xff] %v1649
    %1658 = vset.pattern.permute.xlu0 3
    %1659 = vperm.xlu0 %1658, %v1502
    %v1660 = vpop.permute.xlu0 %1659
    %1662 = vset.pattern.permute.xlu0 3
    %1663 = vperm.xlu0 %1662, %v1503
    %v1664 = vpop.permute.xlu0 %1663
    %1666 = vset.pattern.permute.xlu0 3
    %1667 = vperm.xlu0 %1666, %v1504
    %v1668 = vpop.permute.xlu0 %1667
    %1670 = vset.pattern.permute.xlu0 3
    %1671 = vperm.xlu0 %1670, %v1505
    %v1672 = vpop.permute.xlu0 %1671
    %v1674 = vmul.f32 %v1155, %v1660
    %v1675 = vmul.f32 %v1157, %v1660
    %v1676 = vmul.f32 %v1159, %v1664
    %v1677 = vmul.f32 %v1161, %v1664
    %v1678 = vmul.f32 %v1165, %v1668
    %v1679 = vmul.f32 %v1167, %v1668
    %v1680 = vmul.f32 %v1169, %v1672
    %v1681 = vmul.f32 %v1171, %v1672
    %1682 = vset.pattern.permute.xlu0 1
    %1683 = vperm.xlu0 %1682, %v1562
    %v1684 = vpop.permute.xlu0 %1683
    %1686 = vset.pattern.permute.xlu0 1
    %1687 = vperm.xlu0 %1686, %v1563
    %v1688 = vpop.permute.xlu0 %1687
    %1690 = vset.pattern.permute.xlu0 1
    %1691 = vperm.xlu0 %1690, %v1564
    %v1692 = vpop.permute.xlu0 %1691
    %1694 = vset.pattern.permute.xlu0 1
    %1695 = vperm.xlu0 %1694, %v1565
    %v1696 = vpop.permute.xlu0 %1695
    %v1698 = vadd.f32 %v1674, %v1684
    %v1699 = vadd.f32 %v1675, %v1684
    %v1700 = vadd.f32 %v1676, %v1688
    %v1701 = vadd.f32 %v1677, %v1688
    %v1702 = vadd.f32 %v1678, %v1692
    %v1703 = vadd.f32 %v1679, %v1692
    %v1704 = vadd.f32 %v1680, %v1696
    %v1705 = vadd.f32 %v1681, %v1696
    %v1706 = vmax.f32 %v1698, 0.0
    %v1707 = vmax.f32 %v1699, 0.0
    %v1708 = vmax.f32 %v1700, 0.0
    %v1709 = vmax.f32 %v1701, 0.0
    %v1710 = vmax.f32 %v1702, 0.0
    %v1711 = vmax.f32 %v1703, 0.0
    %v1712 = vmax.f32 %v1704, 0.0
    %v1713 = vmax.f32 %v1705, 0.0
    %v1714 = vld [vmem:[#allocation3 + $0x10] sm:$0xff]
    %v1715 = vld [vmem:[#allocation3 + $0x18] sm:$0xff]
    %v1716 = vld [vmem:[#allocation3 + $0x30] sm:$0xff]
    %v1717 = vld [vmem:[#allocation3 + $0x38] sm:$0xff]
    %v1718 = vld [vmem:[#allocation3 + $0x50] sm:$0xff]
    %v1719 = vld [vmem:[#allocation3 + $0x58] sm:$0xff]
    %v1720 = vld [vmem:[#allocation3 + $0x70] sm:$0xff]
    %v1721 = vld [vmem:[#allocation3 + $0x78] sm:$0xff]
    %v1722 = vadd.f32 %v1714, %v1706
    %v1723 = vadd.f32 %v1715, %v1707
    %v1724 = vadd.f32 %v1716, %v1708
    %v1725 = vadd.f32 %v1717, %v1709
    %v1726 = vadd.f32 %v1718, %v1710
    %v1727 = vadd.f32 %v1719, %v1711
    %v1728 = vadd.f32 %v1720, %v1712
    %v1729 = vadd.f32 %v1721, %v1713
    %v1730 = vmax.f32 %v1722, 0.0
    %v1731 = vmax.f32 %v1723, 0.0
    %v1732 = vmax.f32 %v1724, 0.0
    %v1733 = vmax.f32 %v1725, 0.0
    %v1734 = vmax.f32 %v1726, 0.0
    %v1735 = vmax.f32 %v1727, 0.0
    %v1736 = vmax.f32 %v1728, 0.0
    %v1737 = vmax.f32 %v1729, 0.0
    %s1738 = scalar_lea.vmem [#allocation6], 64
    %1739 = vst [vmem:[%s1738] sm:$0xff] %v1730
    %1740 = vst [vmem:[%s1738 + $0x8] sm:$0xff] %v1731
    %1741 = vst [vmem:[%s1738 + $0x10] sm:$0xff] %v1732
    %1742 = vst [vmem:[%s1738 + $0x18] sm:$0xff] %v1733
    %1743 = vst [vmem:[%s1738 + $0x20] sm:$0xff] %v1734
    %1744 = vst [vmem:[%s1738 + $0x28] sm:$0xff] %v1735
    %1745 = vst [vmem:[%s1738 + $0x30] sm:$0xff] %v1736
    %1746 = vst [vmem:[%s1738 + $0x38] sm:$0xff] %v1737
    // Predicated region
    $region46: #{tpu_custom_call.1} parent=1 // pred_check
      _
    $region47: #{tpu_custom_call.1} parent=1 // pred_check_branch
      %1748 = sbr.rel (0) target = $region49
    $region48: #{tpu_custom_call.1} parent=1 // pred_region
      %s1750 = ssub.s32 2048, 2048
      %1751 = vsyncadd [#allocation5], %s1750
      %s1752 = sshll.u32 [#allocation6], 4
      %s1753 = int_to_ptr.vmem [resolvable:$true] %s1752
      %1758 = dma.vmem_to_hbm [thread:$0]  %s1753, 2048, %s10, [#allocation5], 256, 256, 16
    $region49: #{tpu_custom_call.1} parent=1 // pred_fallthru
      _
    // Predicated region
    $region50: #{tpu_custom_call.1} parent=1 // pred_check
      _
    $region51: #{tpu_custom_call.1} parent=1 // pred_check_branch
      %1760 = sbr.rel (0) target = $region53
    $region52: #{tpu_custom_call.1} parent=1 // pred_region
      %1761 = dma.done [#allocation5], 2048
    $region53: #{tpu_custom_call.1} parent=1 // pred_fallthru
      _
    %1762 = vsyncpa [#allocation4], 1
    %1763 = vsyncpa [#allocation5], 1

</llo_original>
